<compile_context>
chip_gen: v6e
topology: v6e:2x2x1
jax: 0.10.0
libtpu: 0.0.40
codegen_flags: <defaults>
</compile_context>

<pallas_src>
import jax
import jax.numpy as jnp
from jax.experimental import pallas as pl
from jax.experimental.pallas import tpu as pltpu


# ----------------------------------------------------------------------------- kernel
def velocity_bilstm_kernel(xp_ref, wpair_ref, whh_ref, bias_ref, wlin_ref, blin_ref,
                           out_ref):
    """Fused bidirectional LSTM + Linear(2H->1) head.

    xp_ref   : (T*B, 2F)  row t*B+b = [x[t, b, :], x[T-1-t, b, :]]
    wpair_ref: (2F, 8H)   input->gate weights, columns [i_f,i_b,f_f,f_b,o_f,o_b,g_f,g_b]
                          rows 0:F multiply x[t] (fwd), rows F:2F multiply x[T-1-t] (bwd)
    whh_ref  : (2H, 8H)   block-diagonal hidden->gate weights (same column order)
    bias_ref : (1, 8H)    combined b_ih + b_hh for both directions (same column order)
    wlin_ref : (1, 2H)    Linear head weight  [w_fwd | w_bwd]
    blin_ref : (1,)       Linear head bias (SMEM scalar)
    out_ref  : (B, T)     scores
    """
    B, T = out_ref.shape
    H2 = whh_ref.shape[0]          # 2H: [fwd | bwd] hidden concatenated on lanes
    H = H2 // 2

    # --- Hoisted input projection: one well-shaped MXU matmul for every time step and
    #     both directions; entirely off the serial h-dependence chain.
    pre = jnp.dot(xp_ref[...], wpair_ref[...],
                  preferred_element_type=jnp.float32) + bias_ref[...]       # (T*B, 8H)

    whh = whh_ref[...]                                                      # (2H, 8H)
    w_lin = wlin_ref[...]                                                   # (1, 2H)

    h = jnp.zeros((B, H2), jnp.float32)                                     # [h_f | h_b]
    c = jnp.zeros((B, H2), jnp.float32)

    # --- Fully unrolled fused recurrence: step s advances the forward direction at
    #     time s and the backward direction at time T-1-s with a single block-diagonal
    #     matmul, one sigmoid dispatch and one tanh dispatch.
    hs = []
    for s in range(T):
        gates = pre[s * B:(s + 1) * B, :] + jnp.dot(
            h, whh, preferred_element_type=jnp.float32)                     # (B, 8H)
        sig = jax.nn.sigmoid(gates[:, 0:6 * H])    # [i_f,i_b | f_f,f_b | o_f,o_b]
        g_new = jnp.tanh(gates[:, 6 * H:8 * H])    # [g_f, g_b]
        i_cat = sig[:, 0:H2]
        f_cat = sig[:, H2:2 * H2]
        o_cat = sig[:, 2 * H2:3 * H2]
        c = f_cat * c + i_cat * g_new
        h = o_cat * jnp.tanh(c)
        hs.append(h)

    # --- Fused Linear(2H -> 1) head, entirely outside the recurrence.
    w_f = w_lin[:, 0:H]
    w_b = w_lin[:, H:H2]
    cols = []
    for t in range(T):
        hf = hs[t][:, 0:H]              # forward hidden at time t
        hb = hs[T - 1 - t][:, H:H2]     # backward hidden at time t
        cols.append(jnp.sum(hf * w_f, axis=-1, keepdims=True)
                    + jnp.sum(hb * w_b, axis=-1, keepdims=True))            # (B, 1)

    # TODO(synk): at real sequence lengths, pad/tile T to multiples of 128 so this
    # store is an unmasked lane-dense vst and tile T through the grid for VMEM headroom.
    out_ref[...] = jnp.concatenate(cols, axis=1) + blin_ref[0]


# ----------------------------------------------------------------------------- wrapper
def _gate_cols(w_t, H):
    """Split a transposed (in_dim, 4H) weight into PyTorch-ordered (i, f, g, o) blocks."""
    return (w_t[:, 0:H], w_t[:, H:2 * H], w_t[:, 2 * H:3 * H], w_t[:, 3 * H:4 * H])


@jax.jit
def velocity_lstm_forward(x, params):
    """x: (B, T, F) float32 -> scores (B, T) float32 (activation=None path)."""
    B, T, F = x.shape
    H = params["w_hh_f"].shape[1]
    assert H == F, "VelocityLSTM uses hidden_size == num_features"
    f32 = jnp.float32

    # --- input plumbing: time-major, reversed copy packed next to the forward one.
    x_tm = jnp.transpose(x, (1, 0, 2)).astype(f32)                  # (T, B, F)
    x_pair = jnp.concatenate([x_tm, x_tm[::-1]], axis=-1)           # (T, B, 2F)
    xp2d = x_pair.reshape(T * B, 2 * F)

    # --- weights permuted to fused column order [i_f,i_b, f_f,f_b, o_f,o_b, g_f,g_b]
    i_f, f_f, g_f, o_f = _gate_cols(params["w_ih_f"].T.astype(f32), H)   # (F, H) each
    i_b, f_b, g_b, o_b = _gate_cols(params["w_ih_b"].T.astype(f32), H)
    zf = jnp.zeros((F, H), f32)
    w_pair = jnp.concatenate([
        jnp.concatenate([i_f, zf, f_f, zf, o_f, zf, g_f, zf], axis=1),   # rows for x[t]
        jnp.concatenate([zf, i_b, zf, f_b, zf, o_b, zf, g_b], axis=1),   # rows for x[T-1-t]
    ], axis=0)                                                            # (2F, 8H)

    hi_f, hf_f, hg_f, ho_f = _gate_cols(params["w_hh_f"].T.astype(f32), H)
    hi_b, hf_b, hg_b, ho_b = _gate_cols(params["w_hh_b"].T.astype(f32), H)
    zh = jnp.zeros((H, H), f32)
    w_hh = jnp.concatenate([
        jnp.concatenate([hi_f, zh, hf_f, zh, ho_f, zh, hg_f, zh], axis=1),
        jnp.concatenate([zh, hi_b, zh, hf_b, zh, ho_b, zh, hg_b], axis=1),
    ], axis=0)                                                            # (2H, 8H)

    bf = (params["b_ih_f"] + params["b_hh_f"]).astype(f32)                # (4H,) in (i,f,g,o)
    bb = (params["b_ih_b"] + params["b_hh_b"]).astype(f32)
    bias = jnp.concatenate([
        bf[0:H], bb[0:H],                     # i
        bf[H:2 * H], bb[H:2 * H],             # f
        bf[3 * H:4 * H], bb[3 * H:4 * H],     # o
        bf[2 * H:3 * H], bb[2 * H:3 * H],     # g
    ]).reshape(1, 8 * H)

    w_lin = params["w_lin"].astype(f32).reshape(1, 2 * H)
    b_lin = params["b_lin"].astype(f32).reshape(1)

    call = pl.pallas_call(
        velocity_bilstm_kernel,
        out_shape=jax.ShapeDtypeStruct((B, T), f32),
        grid=(1,),
        in_specs=[
            pl.BlockSpec((T * B, 2 * F), lambda i: (0, 0)),
            pl.BlockSpec((2 * F, 8 * H), lambda i: (0, 0)),
            pl.BlockSpec((2 * H, 8 * H), lambda i: (0, 0)),
            pl.BlockSpec((1, 8 * H), lambda i: (0, 0)),
            pl.BlockSpec((1, 2 * H), lambda i: (0, 0)),
            pl.BlockSpec(memory_space=pltpu.MemorySpace.SMEM),   # scalar head bias
        ],
        out_specs=pl.BlockSpec((B, T), lambda i: (0, 0)),
        # NOTE: with the fwd/bwd recurrences fused for ILP there is no independent grid
        # axis worth sharding at B=2; for larger batches, add a leading "parallel" grid
        # axis over batch tiles to use v7x's second TensorCore.
        compiler_params=pltpu.CompilerParams(dimension_semantics=("arbitrary",)),
    )
    return call(xp2d, w_pair, w_hh, bias, w_lin, b_lin)


# ----------------------------------------------------------------------------- params
def init_params(key, num_features):
    """Deterministic synthetic init mirroring the PyTorch module's parameter shapes."""
    H = num_features
    k = 1.0 / float(jnp.sqrt(jnp.float32(H)))
    keys = jax.random.split(key, 10)
    u = lambda kk, shape: jax.random.uniform(kk, shape, jnp.float32, -k, k)
    return {
        "w_ih_f": u(keys[0], (4 * H, H)),   # lstm.weight_ih_l0
        "w_hh_f": u(keys[1], (4 * H, H)),   # lstm.weight_hh_l0
        "b_ih_f": u(keys[2], (4 * H,)),     # lstm.bias_ih_l0
        "b_hh_f": u(keys[3], (4 * H,)),     # lstm.bias_hh_l0
        "w_ih_b": u(keys[4], (4 * H, H)),   # lstm.weight_ih_l0_reverse
        "w_hh_b": u(keys[5], (4 * H, H)),   # lstm.weight_hh_l0_reverse
        "b_ih_b": u(keys[6], (4 * H,)),     # lstm.bias_ih_l0_reverse
        "b_hh_b": u(keys[7], (4 * H,)),     # lstm.bias_hh_l0_reverse
        "w_lin": u(keys[8], (1, 2 * H)),    # hidden2target.weight
        "b_lin": u(keys[9], (1,)),          # hidden2target.bias
    }


# ----------------------------------------------------------------------------- pure-JAX reference
def reference_forward(x, params):
    B, T, F = x.shape
    H = F

    def lstm_dir(wih, whh, b, reverse):
        wih_t, whh_t = wih.T, whh.T
        bb = b.reshape(1, 4 * H)

        def step(carry, x_t):
            h, c = carry
            gates = x_t @ wih_t + h @ whh_t + bb
            i = jax.nn.sigmoid(gates[:, 0 * H:1 * H])
            f = jax.nn.sigmoid(gates[:, 1 * H:2 * H])
            g = jnp.tanh(gates[:, 2 * H:3 * H])
            o = jax.nn.sigmoid(gates[:, 3 * H:4 * H])
            c = f * c + i * g
            h = o * jnp.tanh(c)
            return (h, c), h

        xs = jnp.swapaxes(x, 0, 1)                  # (T, B, F)
        if reverse:
            xs = xs[::-1]
        _, hs = jax.lax.scan(step, (jnp.zeros((B, H)), jnp.zeros((B, H))), xs)
        if reverse:
            hs = hs[::-1]
        return jnp.swapaxes(hs, 0, 1)               # (B, T, H)

    h_f = lstm_dir(params["w_ih_f"], params["w_hh_f"],
                   params["b_ih_f"] + params["b_hh_f"], reverse=False)
    h_b = lstm_dir(params["w_ih_b"], params["w_hh_b"],
                   params["b_ih_b"] + params["b_hh_b"], reverse=True)
    lstm_out = jnp.concatenate([h_f, h_b], axis=-1)                  # (B, T, 2H)
    target = lstm_out @ params["w_lin"].T + params["b_lin"]          # (B, T, 1)
    return target.reshape(B, -1)                                     # (B, T)


# ----------------------------------------------------------------------------- main
if __name__ == "__main__":
    NUM_FEATURES = 32   # hidden size == input feature size (per module __init__)
    BATCH = 2
    SEQ = 8

    root = jax.random.PRNGKey(0)
    k_params, k_x = jax.random.split(root)

    params = init_params(k_params, NUM_FEATURES)
    x = jax.random.normal(k_x, (BATCH, SEQ, NUM_FEATURES), jnp.float32)

    out = velocity_lstm_forward(x, params)
    out = jax.block_until_ready(out)

    ref = reference_forward(x, params)
    assert out.shape == (BATCH, SEQ), out.shape
    assert jnp.allclose(out, ref, atol=1e-4, rtol=1e-4), "kernel/reference mismatch"

    print("KERNEL_OK")
</pallas_src>

<mosaic_0001>
module attributes {stable_mosaic.version = 11 : i64} {
  func.func @velocity_bilstm_kernel(%arg0: i32, %arg1: memref<16x64xf32, #tpu.memory_space<vmem>>, %arg2: memref<64x256xf32, #tpu.memory_space<vmem>>, %arg3: memref<64x256xf32, #tpu.memory_space<vmem>>, %arg4: memref<1x256xf32, #tpu.memory_space<vmem>>, %arg5: memref<1x64xf32, #tpu.memory_space<vmem>>, %arg6: memref<1xf32, #tpu.memory_space<smem>>, %arg7: memref<2x8xf32, #tpu.memory_space<vmem>>) attributes {dimension_semantics = [#tpu.dimension_semantics<arbitrary>], iteration_bounds = array<i64: 1>, scalar_prefetch = 0 : i64, scratch_operands = 0 : i64, tpu.core_type = #tpu.core_type<tc>, window_params = [{pipeline_mode = #tpu.pipeline_mode<synchronous>, transform_indices = @transform_0, window_bounds = array<i64: 16, 64>}, {pipeline_mode = #tpu.pipeline_mode<synchronous>, transform_indices = @transform_1, window_bounds = array<i64: 64, 256>}, {pipeline_mode = #tpu.pipeline_mode<synchronous>, transform_indices = @transform_2, window_bounds = array<i64: 64, 256>}, {pipeline_mode = #tpu.pipeline_mode<synchronous>, transform_indices = @transform_3, window_bounds = array<i64: 1, 256>}, {pipeline_mode = #tpu.pipeline_mode<synchronous>, transform_indices = @transform_4, window_bounds = array<i64: 1, 64>}, {transform_indices = @transform_5, window_bounds = array<i64: 1>}, {pipeline_mode = #tpu.pipeline_mode<synchronous>, transform_indices = @transform_6, window_bounds = array<i64: 2, 8>}]} {
    %c0 = arith.constant 0 : index
    %c0_0 = arith.constant 0 : index
    %0 = vector.load %arg1[%c0, %c0_0] : memref<16x64xf32, #tpu.memory_space<vmem>>, vector<16x64xf32>
    %c0_1 = arith.constant 0 : index
    %c0_2 = arith.constant 0 : index
    %1 = vector.load %arg2[%c0_1, %c0_2] : memref<64x256xf32, #tpu.memory_space<vmem>>, vector<64x256xf32>
    %cst = arith.constant dense<0.000000e+00> : vector<16x256xf32>
    %2 = tpu.matmul %0, %1, %cst {dimension_numbers = #tpu.dot_dimension_numbers<[1], [0], [0], [1], [0, 0, 1, 1], [], []>} : vector<16x64xf32>, vector<64x256xf32>, vector<16x256xf32> -> vector<16x256xf32>
    %c0_3 = arith.constant 0 : index
    %c0_4 = arith.constant 0 : index
    %3 = vector.load %arg4[%c0_3, %c0_4] : memref<1x256xf32, #tpu.memory_space<vmem>>, vector<1x256xf32>
    %4 = vector.broadcast %3 : vector<1x256xf32> to vector<16x256xf32>
    %5 = arith.addf %2, %4 : vector<16x256xf32>
    %c0_5 = arith.constant 0 : index
    %c0_6 = arith.constant 0 : index
    %6 = vector.load %arg3[%c0_5, %c0_6] : memref<64x256xf32, #tpu.memory_space<vmem>>, vector<64x256xf32>
    %c0_7 = arith.constant 0 : index
    %c0_8 = arith.constant 0 : index
    %7 = vector.load %arg5[%c0_7, %c0_8] : memref<1x64xf32, #tpu.memory_space<vmem>>, vector<1x64xf32>
    %cst_9 = arith.constant 0.000000e+00 : f32
    %8 = vector.broadcast %cst_9 : f32 to vector<2x64xf32>
    %cst_10 = arith.constant 0.000000e+00 : f32
    %9 = vector.broadcast %cst_10 : f32 to vector<2x64xf32>
    %10 = vector.extract_strided_slice %5 {offsets = [0, 0], sizes = [2, 256], strides = [1, 1]} : vector<16x256xf32> to vector<2x256xf32>
    %cst_11 = arith.constant dense<0.000000e+00> : vector<2x256xf32>
    %11 = tpu.matmul %8, %6, %cst_11 {dimension_numbers = #tpu.dot_dimension_numbers<[1], [0], [0], [1], [0, 0, 1, 1], [], []>} : vector<2x64xf32>, vector<64x256xf32>, vector<2x256xf32> -> vector<2x256xf32>
    %12 = arith.addf %10, %11 : vector<2x256xf32>
    %13 = vector.extract_strided_slice %12 {offsets = [0, 0], sizes = [2, 192], strides = [1, 1]} : vector<2x256xf32> to vector<2x192xf32>
    %14 = arith.negf %13 : vector<2x192xf32>
    %15 = math.exp %14 : vector<2x192xf32>
    %cst_12 = arith.constant 1.000000e+00 : f32
    %16 = vector.broadcast %cst_12 : f32 to vector<2x192xf32>
    %17 = arith.addf %16, %15 : vector<2x192xf32>
    %18 = arith.divf %16, %17 : vector<2x192xf32>
    %19 = vector.extract_strided_slice %12 {offsets = [0, 192], sizes = [2, 64], strides = [1, 1]} : vector<2x256xf32> to vector<2x64xf32>
    %20 = math.tanh %19 : vector<2x64xf32>
    %21 = vector.extract_strided_slice %18 {offsets = [0, 0], sizes = [2, 64], strides = [1, 1]} : vector<2x192xf32> to vector<2x64xf32>
    %22 = vector.extract_strided_slice %18 {offsets = [0, 64], sizes = [2, 64], strides = [1, 1]} : vector<2x192xf32> to vector<2x64xf32>
    %23 = vector.extract_strided_slice %18 {offsets = [0, 128], sizes = [2, 64], strides = [1, 1]} : vector<2x192xf32> to vector<2x64xf32>
    %24 = arith.mulf %22, %9 : vector<2x64xf32>
    %25 = arith.mulf %21, %20 : vector<2x64xf32>
    %26 = arith.addf %24, %25 : vector<2x64xf32>
    %27 = math.tanh %26 : vector<2x64xf32>
    %28 = arith.mulf %23, %27 : vector<2x64xf32>
    %29 = vector.extract_strided_slice %5 {offsets = [2, 0], sizes = [2, 256], strides = [1, 1]} : vector<16x256xf32> to vector<2x256xf32>
    %cst_13 = arith.constant dense<0.000000e+00> : vector<2x256xf32>
    %30 = tpu.matmul %28, %6, %cst_13 {dimension_numbers = #tpu.dot_dimension_numbers<[1], [0], [0], [1], [0, 0, 1, 1], [], []>} : vector<2x64xf32>, vector<64x256xf32>, vector<2x256xf32> -> vector<2x256xf32>
    %31 = arith.addf %29, %30 : vector<2x256xf32>
    %32 = vector.extract_strided_slice %31 {offsets = [0, 0], sizes = [2, 192], strides = [1, 1]} : vector<2x256xf32> to vector<2x192xf32>
    %33 = arith.negf %32 : vector<2x192xf32>
    %34 = math.exp %33 : vector<2x192xf32>
    %cst_14 = arith.constant 1.000000e+00 : f32
    %35 = vector.broadcast %cst_14 : f32 to vector<2x192xf32>
    %36 = arith.addf %35, %34 : vector<2x192xf32>
    %37 = arith.divf %35, %36 : vector<2x192xf32>
    %38 = vector.extract_strided_slice %31 {offsets = [0, 192], sizes = [2, 64], strides = [1, 1]} : vector<2x256xf32> to vector<2x64xf32>
    %39 = math.tanh %38 : vector<2x64xf32>
    %40 = vector.extract_strided_slice %37 {offsets = [0, 0], sizes = [2, 64], strides = [1, 1]} : vector<2x192xf32> to vector<2x64xf32>
    %41 = vector.extract_strided_slice %37 {offsets = [0, 64], sizes = [2, 64], strides = [1, 1]} : vector<2x192xf32> to vector<2x64xf32>
    %42 = vector.extract_strided_slice %37 {offsets = [0, 128], sizes = [2, 64], strides = [1, 1]} : vector<2x192xf32> to vector<2x64xf32>
    %43 = arith.mulf %41, %26 : vector<2x64xf32>
    %44 = arith.mulf %40, %39 : vector<2x64xf32>
    %45 = arith.addf %43, %44 : vector<2x64xf32>
    %46 = math.tanh %45 : vector<2x64xf32>
    %47 = arith.mulf %42, %46 : vector<2x64xf32>
    %48 = vector.extract_strided_slice %5 {offsets = [4, 0], sizes = [2, 256], strides = [1, 1]} : vector<16x256xf32> to vector<2x256xf32>
    %cst_15 = arith.constant dense<0.000000e+00> : vector<2x256xf32>
    %49 = tpu.matmul %47, %6, %cst_15 {dimension_numbers = #tpu.dot_dimension_numbers<[1], [0], [0], [1], [0, 0, 1, 1], [], []>} : vector<2x64xf32>, vector<64x256xf32>, vector<2x256xf32> -> vector<2x256xf32>
    %50 = arith.addf %48, %49 : vector<2x256xf32>
    %51 = vector.extract_strided_slice %50 {offsets = [0, 0], sizes = [2, 192], strides = [1, 1]} : vector<2x256xf32> to vector<2x192xf32>
    %52 = arith.negf %51 : vector<2x192xf32>
    %53 = math.exp %52 : vector<2x192xf32>
    %cst_16 = arith.constant 1.000000e+00 : f32
    %54 = vector.broadcast %cst_16 : f32 to vector<2x192xf32>
    %55 = arith.addf %54, %53 : vector<2x192xf32>
    %56 = arith.divf %54, %55 : vector<2x192xf32>
    %57 = vector.extract_strided_slice %50 {offsets = [0, 192], sizes = [2, 64], strides = [1, 1]} : vector<2x256xf32> to vector<2x64xf32>
    %58 = math.tanh %57 : vector<2x64xf32>
    %59 = vector.extract_strided_slice %56 {offsets = [0, 0], sizes = [2, 64], strides = [1, 1]} : vector<2x192xf32> to vector<2x64xf32>
    %60 = vector.extract_strided_slice %56 {offsets = [0, 64], sizes = [2, 64], strides = [1, 1]} : vector<2x192xf32> to vector<2x64xf32>
    %61 = vector.extract_strided_slice %56 {offsets = [0, 128], sizes = [2, 64], strides = [1, 1]} : vector<2x192xf32> to vector<2x64xf32>
    %62 = arith.mulf %60, %45 : vector<2x64xf32>
    %63 = arith.mulf %59, %58 : vector<2x64xf32>
    %64 = arith.addf %62, %63 : vector<2x64xf32>
    %65 = math.tanh %64 : vector<2x64xf32>
    %66 = arith.mulf %61, %65 : vector<2x64xf32>
    %67 = vector.extract_strided_slice %5 {offsets = [6, 0], sizes = [2, 256], strides = [1, 1]} : vector<16x256xf32> to vector<2x256xf32>
    %cst_17 = arith.constant dense<0.000000e+00> : vector<2x256xf32>
    %68 = tpu.matmul %66, %6, %cst_17 {dimension_numbers = #tpu.dot_dimension_numbers<[1], [0], [0], [1], [0, 0, 1, 1], [], []>} : vector<2x64xf32>, vector<64x256xf32>, vector<2x256xf32> -> vector<2x256xf32>
    %69 = arith.addf %67, %68 : vector<2x256xf32>
    %70 = vector.extract_strided_slice %69 {offsets = [0, 0], sizes = [2, 192], strides = [1, 1]} : vector<2x256xf32> to vector<2x192xf32>
    %71 = arith.negf %70 : vector<2x192xf32>
    %72 = math.exp %71 : vector<2x192xf32>
    %cst_18 = arith.constant 1.000000e+00 : f32
    %73 = vector.broadcast %cst_18 : f32 to vector<2x192xf32>
    %74 = arith.addf %73, %72 : vector<2x192xf32>
    %75 = arith.divf %73, %74 : vector<2x192xf32>
    %76 = vector.extract_strided_slice %69 {offsets = [0, 192], sizes = [2, 64], strides = [1, 1]} : vector<2x256xf32> to vector<2x64xf32>
    %77 = math.tanh %76 : vector<2x64xf32>
    %78 = vector.extract_strided_slice %75 {offsets = [0, 0], sizes = [2, 64], strides = [1, 1]} : vector<2x192xf32> to vector<2x64xf32>
    %79 = vector.extract_strided_slice %75 {offsets = [0, 64], sizes = [2, 64], strides = [1, 1]} : vector<2x192xf32> to vector<2x64xf32>
    %80 = vector.extract_strided_slice %75 {offsets = [0, 128], sizes = [2, 64], strides = [1, 1]} : vector<2x192xf32> to vector<2x64xf32>
    %81 = arith.mulf %79, %64 : vector<2x64xf32>
    %82 = arith.mulf %78, %77 : vector<2x64xf32>
    %83 = arith.addf %81, %82 : vector<2x64xf32>
    %84 = math.tanh %83 : vector<2x64xf32>
    %85 = arith.mulf %80, %84 : vector<2x64xf32>
    %86 = vector.extract_strided_slice %5 {offsets = [8, 0], sizes = [2, 256], strides = [1, 1]} : vector<16x256xf32> to vector<2x256xf32>
    %cst_19 = arith.constant dense<0.000000e+00> : vector<2x256xf32>
    %87 = tpu.matmul %85, %6, %cst_19 {dimension_numbers = #tpu.dot_dimension_numbers<[1], [0], [0], [1], [0, 0, 1, 1], [], []>} : vector<2x64xf32>, vector<64x256xf32>, vector<2x256xf32> -> vector<2x256xf32>
    %88 = arith.addf %86, %87 : vector<2x256xf32>
    %89 = vector.extract_strided_slice %88 {offsets = [0, 0], sizes = [2, 192], strides = [1, 1]} : vector<2x256xf32> to vector<2x192xf32>
    %90 = arith.negf %89 : vector<2x192xf32>
    %91 = math.exp %90 : vector<2x192xf32>
    %cst_20 = arith.constant 1.000000e+00 : f32
    %92 = vector.broadcast %cst_20 : f32 to vector<2x192xf32>
    %93 = arith.addf %92, %91 : vector<2x192xf32>
    %94 = arith.divf %92, %93 : vector<2x192xf32>
    %95 = vector.extract_strided_slice %88 {offsets = [0, 192], sizes = [2, 64], strides = [1, 1]} : vector<2x256xf32> to vector<2x64xf32>
    %96 = math.tanh %95 : vector<2x64xf32>
    %97 = vector.extract_strided_slice %94 {offsets = [0, 0], sizes = [2, 64], strides = [1, 1]} : vector<2x192xf32> to vector<2x64xf32>
    %98 = vector.extract_strided_slice %94 {offsets = [0, 64], sizes = [2, 64], strides = [1, 1]} : vector<2x192xf32> to vector<2x64xf32>
    %99 = vector.extract_strided_slice %94 {offsets = [0, 128], sizes = [2, 64], strides = [1, 1]} : vector<2x192xf32> to vector<2x64xf32>
    %100 = arith.mulf %98, %83 : vector<2x64xf32>
    %101 = arith.mulf %97, %96 : vector<2x64xf32>
    %102 = arith.addf %100, %101 : vector<2x64xf32>
    %103 = math.tanh %102 : vector<2x64xf32>
    %104 = arith.mulf %99, %103 : vector<2x64xf32>
    %105 = vector.extract_strided_slice %5 {offsets = [10, 0], sizes = [2, 256], strides = [1, 1]} : vector<16x256xf32> to vector<2x256xf32>
    %cst_21 = arith.constant dense<0.000000e+00> : vector<2x256xf32>
    %106 = tpu.matmul %104, %6, %cst_21 {dimension_numbers = #tpu.dot_dimension_numbers<[1], [0], [0], [1], [0, 0, 1, 1], [], []>} : vector<2x64xf32>, vector<64x256xf32>, vector<2x256xf32> -> vector<2x256xf32>
    %107 = arith.addf %105, %106 : vector<2x256xf32>
    %108 = vector.extract_strided_slice %107 {offsets = [0, 0], sizes = [2, 192], strides = [1, 1]} : vector<2x256xf32> to vector<2x192xf32>
    %109 = arith.negf %108 : vector<2x192xf32>
    %110 = math.exp %109 : vector<2x192xf32>
    %cst_22 = arith.constant 1.000000e+00 : f32
    %111 = vector.broadcast %cst_22 : f32 to vector<2x192xf32>
    %112 = arith.addf %111, %110 : vector<2x192xf32>
    %113 = arith.divf %111, %112 : vector<2x192xf32>
    %114 = vector.extract_strided_slice %107 {offsets = [0, 192], sizes = [2, 64], strides = [1, 1]} : vector<2x256xf32> to vector<2x64xf32>
    %115 = math.tanh %114 : vector<2x64xf32>
    %116 = vector.extract_strided_slice %113 {offsets = [0, 0], sizes = [2, 64], strides = [1, 1]} : vector<2x192xf32> to vector<2x64xf32>
    %117 = vector.extract_strided_slice %113 {offsets = [0, 64], sizes = [2, 64], strides = [1, 1]} : vector<2x192xf32> to vector<2x64xf32>
    %118 = vector.extract_strided_slice %113 {offsets = [0, 128], sizes = [2, 64], strides = [1, 1]} : vector<2x192xf32> to vector<2x64xf32>
    %119 = arith.mulf %117, %102 : vector<2x64xf32>
    %120 = arith.mulf %116, %115 : vector<2x64xf32>
    %121 = arith.addf %119, %120 : vector<2x64xf32>
    %122 = math.tanh %121 : vector<2x64xf32>
    %123 = arith.mulf %118, %122 : vector<2x64xf32>
    %124 = vector.extract_strided_slice %5 {offsets = [12, 0], sizes = [2, 256], strides = [1, 1]} : vector<16x256xf32> to vector<2x256xf32>
    %cst_23 = arith.constant dense<0.000000e+00> : vector<2x256xf32>
    %125 = tpu.matmul %123, %6, %cst_23 {dimension_numbers = #tpu.dot_dimension_numbers<[1], [0], [0], [1], [0, 0, 1, 1], [], []>} : vector<2x64xf32>, vector<64x256xf32>, vector<2x256xf32> -> vector<2x256xf32>
    %126 = arith.addf %124, %125 : vector<2x256xf32>
    %127 = vector.extract_strided_slice %126 {offsets = [0, 0], sizes = [2, 192], strides = [1, 1]} : vector<2x256xf32> to vector<2x192xf32>
    %128 = arith.negf %127 : vector<2x192xf32>
    %129 = math.exp %128 : vector<2x192xf32>
    %cst_24 = arith.constant 1.000000e+00 : f32
    %130 = vector.broadcast %cst_24 : f32 to vector<2x192xf32>
    %131 = arith.addf %130, %129 : vector<2x192xf32>
    %132 = arith.divf %130, %131 : vector<2x192xf32>
    %133 = vector.extract_strided_slice %126 {offsets = [0, 192], sizes = [2, 64], strides = [1, 1]} : vector<2x256xf32> to vector<2x64xf32>
    %134 = math.tanh %133 : vector<2x64xf32>
    %135 = vector.extract_strided_slice %132 {offsets = [0, 0], sizes = [2, 64], strides = [1, 1]} : vector<2x192xf32> to vector<2x64xf32>
    %136 = vector.extract_strided_slice %132 {offsets = [0, 64], sizes = [2, 64], strides = [1, 1]} : vector<2x192xf32> to vector<2x64xf32>
    %137 = vector.extract_strided_slice %132 {offsets = [0, 128], sizes = [2, 64], strides = [1, 1]} : vector<2x192xf32> to vector<2x64xf32>
    %138 = arith.mulf %136, %121 : vector<2x64xf32>
    %139 = arith.mulf %135, %134 : vector<2x64xf32>
    %140 = arith.addf %138, %139 : vector<2x64xf32>
    %141 = math.tanh %140 : vector<2x64xf32>
    %142 = arith.mulf %137, %141 : vector<2x64xf32>
    %143 = vector.extract_strided_slice %5 {offsets = [14, 0], sizes = [2, 256], strides = [1, 1]} : vector<16x256xf32> to vector<2x256xf32>
    %cst_25 = arith.constant dense<0.000000e+00> : vector<2x256xf32>
    %144 = tpu.matmul %142, %6, %cst_25 {dimension_numbers = #tpu.dot_dimension_numbers<[1], [0], [0], [1], [0, 0, 1, 1], [], []>} : vector<2x64xf32>, vector<64x256xf32>, vector<2x256xf32> -> vector<2x256xf32>
    %145 = arith.addf %143, %144 : vector<2x256xf32>
    %146 = vector.extract_strided_slice %145 {offsets = [0, 0], sizes = [2, 192], strides = [1, 1]} : vector<2x256xf32> to vector<2x192xf32>
    %147 = arith.negf %146 : vector<2x192xf32>
    %148 = math.exp %147 : vector<2x192xf32>
    %cst_26 = arith.constant 1.000000e+00 : f32
    %149 = vector.broadcast %cst_26 : f32 to vector<2x192xf32>
    %150 = arith.addf %149, %148 : vector<2x192xf32>
    %151 = arith.divf %149, %150 : vector<2x192xf32>
    %152 = vector.extract_strided_slice %145 {offsets = [0, 192], sizes = [2, 64], strides = [1, 1]} : vector<2x256xf32> to vector<2x64xf32>
    %153 = math.tanh %152 : vector<2x64xf32>
    %154 = vector.extract_strided_slice %151 {offsets = [0, 0], sizes = [2, 64], strides = [1, 1]} : vector<2x192xf32> to vector<2x64xf32>
    %155 = vector.extract_strided_slice %151 {offsets = [0, 64], sizes = [2, 64], strides = [1, 1]} : vector<2x192xf32> to vector<2x64xf32>
    %156 = vector.extract_strided_slice %151 {offsets = [0, 128], sizes = [2, 64], strides = [1, 1]} : vector<2x192xf32> to vector<2x64xf32>
    %157 = arith.mulf %155, %140 : vector<2x64xf32>
    %158 = arith.mulf %154, %153 : vector<2x64xf32>
    %159 = arith.addf %157, %158 : vector<2x64xf32>
    %160 = math.tanh %159 : vector<2x64xf32>
    %161 = arith.mulf %156, %160 : vector<2x64xf32>
    %162 = vector.extract_strided_slice %7 {offsets = [0, 0], sizes = [1, 32], strides = [1, 1]} : vector<1x64xf32> to vector<1x32xf32>
    %163 = vector.extract_strided_slice %7 {offsets = [0, 32], sizes = [1, 32], strides = [1, 1]} : vector<1x64xf32> to vector<1x32xf32>
    %164 = vector.extract_strided_slice %28 {offsets = [0, 0], sizes = [2, 32], strides = [1, 1]} : vector<2x64xf32> to vector<2x32xf32>
    %165 = vector.extract_strided_slice %161 {offsets = [0, 32], sizes = [2, 32], strides = [1, 1]} : vector<2x64xf32> to vector<2x32xf32>
    %166 = vector.broadcast %162 : vector<1x32xf32> to vector<2x32xf32>
    %167 = arith.mulf %164, %166 : vector<2x32xf32>
    %cst_27 = arith.constant dense<0.000000e+00> : vector<2xf32>
    %168 = vector.multi_reduction <add>, %167, %cst_27 [1] : vector<2x32xf32> to vector<2xf32>
    %169 = vector.shape_cast %168 : vector<2xf32> to vector<2x1xf32>
    %170 = vector.broadcast %163 : vector<1x32xf32> to vector<2x32xf32>
    %171 = arith.mulf %165, %170 : vector<2x32xf32>
    %cst_28 = arith.constant dense<0.000000e+00> : vector<2xf32>
    %172 = vector.multi_reduction <add>, %171, %cst_28 [1] : vector<2x32xf32> to vector<2xf32>
    %173 = vector.shape_cast %172 : vector<2xf32> to vector<2x1xf32>
    %174 = arith.addf %169, %173 : vector<2x1xf32>
    %175 = vector.extract_strided_slice %47 {offsets = [0, 0], sizes = [2, 32], strides = [1, 1]} : vector<2x64xf32> to vector<2x32xf32>
    %176 = vector.extract_strided_slice %142 {offsets = [0, 32], sizes = [2, 32], strides = [1, 1]} : vector<2x64xf32> to vector<2x32xf32>
    %177 = vector.broadcast %162 : vector<1x32xf32> to vector<2x32xf32>
    %178 = arith.mulf %175, %177 : vector<2x32xf32>
    %cst_29 = arith.constant dense<0.000000e+00> : vector<2xf32>
    %179 = vector.multi_reduction <add>, %178, %cst_29 [1] : vector<2x32xf32> to vector<2xf32>
    %180 = vector.shape_cast %179 : vector<2xf32> to vector<2x1xf32>
    %181 = vector.broadcast %163 : vector<1x32xf32> to vector<2x32xf32>
    %182 = arith.mulf %176, %181 : vector<2x32xf32>
    %cst_30 = arith.constant dense<0.000000e+00> : vector<2xf32>
    %183 = vector.multi_reduction <add>, %182, %cst_30 [1] : vector<2x32xf32> to vector<2xf32>
    %184 = vector.shape_cast %183 : vector<2xf32> to vector<2x1xf32>
    %185 = arith.addf %180, %184 : vector<2x1xf32>
    %186 = vector.extract_strided_slice %66 {offsets = [0, 0], sizes = [2, 32], strides = [1, 1]} : vector<2x64xf32> to vector<2x32xf32>
    %187 = vector.extract_strided_slice %123 {offsets = [0, 32], sizes = [2, 32], strides = [1, 1]} : vector<2x64xf32> to vector<2x32xf32>
    %188 = vector.broadcast %162 : vector<1x32xf32> to vector<2x32xf32>
    %189 = arith.mulf %186, %188 : vector<2x32xf32>
    %cst_31 = arith.constant dense<0.000000e+00> : vector<2xf32>
    %190 = vector.multi_reduction <add>, %189, %cst_31 [1] : vector<2x32xf32> to vector<2xf32>
    %191 = vector.shape_cast %190 : vector<2xf32> to vector<2x1xf32>
    %192 = vector.broadcast %163 : vector<1x32xf32> to vector<2x32xf32>
    %193 = arith.mulf %187, %192 : vector<2x32xf32>
    %cst_32 = arith.constant dense<0.000000e+00> : vector<2xf32>
    %194 = vector.multi_reduction <add>, %193, %cst_32 [1] : vector<2x32xf32> to vector<2xf32>
    %195 = vector.shape_cast %194 : vector<2xf32> to vector<2x1xf32>
    %196 = arith.addf %191, %195 : vector<2x1xf32>
    %197 = vector.extract_strided_slice %85 {offsets = [0, 0], sizes = [2, 32], strides = [1, 1]} : vector<2x64xf32> to vector<2x32xf32>
    %198 = vector.extract_strided_slice %104 {offsets = [0, 32], sizes = [2, 32], strides = [1, 1]} : vector<2x64xf32> to vector<2x32xf32>
    %199 = vector.broadcast %162 : vector<1x32xf32> to vector<2x32xf32>
    %200 = arith.mulf %197, %199 : vector<2x32xf32>
    %cst_33 = arith.constant dense<0.000000e+00> : vector<2xf32>
    %201 = vector.multi_reduction <add>, %200, %cst_33 [1] : vector<2x32xf32> to vector<2xf32>
    %202 = vector.shape_cast %201 : vector<2xf32> to vector<2x1xf32>
    %203 = vector.broadcast %163 : vector<1x32xf32> to vector<2x32xf32>
    %204 = arith.mulf %198, %203 : vector<2x32xf32>
    %cst_34 = arith.constant dense<0.000000e+00> : vector<2xf32>
    %205 = vector.multi_reduction <add>, %204, %cst_34 [1] : vector<2x32xf32> to vector<2xf32>
    %206 = vector.shape_cast %205 : vector<2xf32> to vector<2x1xf32>
    %207 = arith.addf %202, %206 : vector<2x1xf32>
    %208 = vector.extract_strided_slice %104 {offsets = [0, 0], sizes = [2, 32], strides = [1, 1]} : vector<2x64xf32> to vector<2x32xf32>
    %209 = vector.extract_strided_slice %85 {offsets = [0, 32], sizes = [2, 32], strides = [1, 1]} : vector<2x64xf32> to vector<2x32xf32>
    %210 = vector.broadcast %162 : vector<1x32xf32> to vector<2x32xf32>
    %211 = arith.mulf %208, %210 : vector<2x32xf32>
    %cst_35 = arith.constant dense<0.000000e+00> : vector<2xf32>
    %212 = vector.multi_reduction <add>, %211, %cst_35 [1] : vector<2x32xf32> to vector<2xf32>
    %213 = vector.shape_cast %212 : vector<2xf32> to vector<2x1xf32>
    %214 = vector.broadcast %163 : vector<1x32xf32> to vector<2x32xf32>
    %215 = arith.mulf %209, %214 : vector<2x32xf32>
    %cst_36 = arith.constant dense<0.000000e+00> : vector<2xf32>
    %216 = vector.multi_reduction <add>, %215, %cst_36 [1] : vector<2x32xf32> to vector<2xf32>
    %217 = vector.shape_cast %216 : vector<2xf32> to vector<2x1xf32>
    %218 = arith.addf %213, %217 : vector<2x1xf32>
    %219 = vector.extract_strided_slice %123 {offsets = [0, 0], sizes = [2, 32], strides = [1, 1]} : vector<2x64xf32> to vector<2x32xf32>
    %220 = vector.extract_strided_slice %66 {offsets = [0, 32], sizes = [2, 32], strides = [1, 1]} : vector<2x64xf32> to vector<2x32xf32>
    %221 = vector.broadcast %162 : vector<1x32xf32> to vector<2x32xf32>
    %222 = arith.mulf %219, %221 : vector<2x32xf32>
    %cst_37 = arith.constant dense<0.000000e+00> : vector<2xf32>
    %223 = vector.multi_reduction <add>, %222, %cst_37 [1] : vector<2x32xf32> to vector<2xf32>
    %224 = vector.shape_cast %223 : vector<2xf32> to vector<2x1xf32>
    %225 = vector.broadcast %163 : vector<1x32xf32> to vector<2x32xf32>
    %226 = arith.mulf %220, %225 : vector<2x32xf32>
    %cst_38 = arith.constant dense<0.000000e+00> : vector<2xf32>
    %227 = vector.multi_reduction <add>, %226, %cst_38 [1] : vector<2x32xf32> to vector<2xf32>
    %228 = vector.shape_cast %227 : vector<2xf32> to vector<2x1xf32>
    %229 = arith.addf %224, %228 : vector<2x1xf32>
    %230 = vector.extract_strided_slice %142 {offsets = [0, 0], sizes = [2, 32], strides = [1, 1]} : vector<2x64xf32> to vector<2x32xf32>
    %231 = vector.extract_strided_slice %47 {offsets = [0, 32], sizes = [2, 32], strides = [1, 1]} : vector<2x64xf32> to vector<2x32xf32>
    %232 = vector.broadcast %162 : vector<1x32xf32> to vector<2x32xf32>
    %233 = arith.mulf %230, %232 : vector<2x32xf32>
    %cst_39 = arith.constant dense<0.000000e+00> : vector<2xf32>
    %234 = vector.multi_reduction <add>, %233, %cst_39 [1] : vector<2x32xf32> to vector<2xf32>
    %235 = vector.shape_cast %234 : vector<2xf32> to vector<2x1xf32>
    %236 = vector.broadcast %163 : vector<1x32xf32> to vector<2x32xf32>
    %237 = arith.mulf %231, %236 : vector<2x32xf32>
    %cst_40 = arith.constant dense<0.000000e+00> : vector<2xf32>
    %238 = vector.multi_reduction <add>, %237, %cst_40 [1] : vector<2x32xf32> to vector<2xf32>
    %239 = vector.shape_cast %238 : vector<2xf32> to vector<2x1xf32>
    %240 = arith.addf %235, %239 : vector<2x1xf32>
    %241 = vector.extract_strided_slice %161 {offsets = [0, 0], sizes = [2, 32], strides = [1, 1]} : vector<2x64xf32> to vector<2x32xf32>
    %242 = vector.extract_strided_slice %28 {offsets = [0, 32], sizes = [2, 32], strides = [1, 1]} : vector<2x64xf32> to vector<2x32xf32>
    %243 = vector.broadcast %162 : vector<1x32xf32> to vector<2x32xf32>
    %244 = arith.mulf %241, %243 : vector<2x32xf32>
    %cst_41 = arith.constant dense<0.000000e+00> : vector<2xf32>
    %245 = vector.multi_reduction <add>, %244, %cst_41 [1] : vector<2x32xf32> to vector<2xf32>
    %246 = vector.shape_cast %245 : vector<2xf32> to vector<2x1xf32>
    %247 = vector.broadcast %163 : vector<1x32xf32> to vector<2x32xf32>
    %248 = arith.mulf %242, %247 : vector<2x32xf32>
    %cst_42 = arith.constant dense<0.000000e+00> : vector<2xf32>
    %249 = vector.multi_reduction <add>, %248, %cst_42 [1] : vector<2x32xf32> to vector<2xf32>
    %250 = vector.shape_cast %249 : vector<2xf32> to vector<2x1xf32>
    %251 = arith.addf %246, %250 : vector<2x1xf32>
    %252 = tpu.concatenate %174, %185, %196, %207, %218, %229, %240, %251 in 1 : vector<2x1xf32>, vector<2x1xf32>, vector<2x1xf32>, vector<2x1xf32>, vector<2x1xf32>, vector<2x1xf32>, vector<2x1xf32>, vector<2x1xf32> -> vector<2x8xf32>
    %c0_43 = arith.constant 0 : index
    %253 = memref.load %arg6[%c0_43] : memref<1xf32, #tpu.memory_space<smem>>
    %254 = vector.broadcast %253 : f32 to vector<2x8xf32>
    %255 = arith.addf %252, %254 : vector<2x8xf32>
    %c0_44 = arith.constant 0 : index
    %c0_45 = arith.constant 0 : index
    %256 = vector.load %arg7[%c0_44, %c0_45] : memref<2x8xf32, #tpu.memory_space<vmem>>, vector<2x8xf32>
    tpu.vector_store %arg7[%c0_44, %c0_45], %255 {strides = array<i32>} : memref<2x8xf32, #tpu.memory_space<vmem>>, vector<2x8xf32>,
    return
  }
  func.func @transform_0(%arg0: i32) -> (i32, i32) {
    %c0_i32 = arith.constant 0 : i32
    %c0_i32_0 = arith.constant 0 : i32
    %c0_i32_1 = arith.constant 0 : i32
    return %c0_i32, %c0_i32_0 : i32, i32
  }
  func.func @transform_1(%arg0: i32) -> (i32, i32) {
    %c0_i32 = arith.constant 0 : i32
    %c0_i32_0 = arith.constant 0 : i32
    %c0_i32_1 = arith.constant 0 : i32
    return %c0_i32, %c0_i32_0 : i32, i32
  }
  func.func @transform_2(%arg0: i32) -> (i32, i32) {
    %c0_i32 = arith.constant 0 : i32
    %c0_i32_0 = arith.constant 0 : i32
    %c0_i32_1 = arith.constant 0 : i32
    return %c0_i32, %c0_i32_0 : i32, i32
  }
  func.func @transform_3(%arg0: i32) -> (i32, i32) {
    %c0_i32 = arith.constant 0 : i32
    %c0_i32_0 = arith.constant 0 : i32
    %c0_i32_1 = arith.constant 0 : i32
    return %c0_i32, %c0_i32_0 : i32, i32
  }
  func.func @transform_4(%arg0: i32) -> (i32, i32) {
    %c0_i32 = arith.constant 0 : i32
    %c0_i32_0 = arith.constant 0 : i32
    %c0_i32_1 = arith.constant 0 : i32
    return %c0_i32, %c0_i32_0 : i32, i32
  }
  func.func @transform_5(%arg0: i32) -> i32 {
    %c0_i32 = arith.constant 0 : i32
    %c0_i32_0 = arith.constant 0 : i32
    return %c0_i32 : i32
  }
  func.func @transform_6(%arg0: i32) -> (i32, i32) {
    %c0_i32 = arith.constant 0 : i32
    %c0_i32_0 = arith.constant 0 : i32
    %c0_i32_1 = arith.constant 0 : i32
    return %c0_i32, %c0_i32_0 : i32, i32
  }
}

</mosaic_0001>

<llo_original>
// kernel: velocity_lstm_forward.1
$region0: #{velocity_lstm_forward.1}
  #allocation0 [shape = 'u32[]', space=smem, size = 0x4, offset = 0x4, fixed_abs, tag = 'smem constant byte address 0x4 - core index']
  #allocation1 [shape = 'u32[144,128]{1,0:T(1,128)}', space=vmem, size = 0x12000, scoped, tag = 'internal scratch']
  #allocation2 [shape = 'f32[1]{0:T(128)S(6)}', space=smem, size = 0x200, scoped, tag = 'scoped memory for velocity_lstm_forward.1']
  %s0 = inlined_call_operand.vmem [shape: f32[16,64], index: 0, kind: input, shape index: {}]
  %s1 = inlined_call_operand.vmem [shape: f32[64,256], index: 1, kind: input, shape index: {}]
  %s2 = inlined_call_operand.vmem [shape: f32[64,256], index: 2, kind: input, shape index: {}]
  %s3 = inlined_call_operand.vmem [shape: f32[1,256], index: 3, kind: input, shape index: {}]
  %s4 = inlined_call_operand.vmem [shape: f32[1,64], index: 4, kind: input, shape index: {}]
  %s5 = inlined_call_operand.<no memory space> [shape: f32[1], index: 5, kind: input, shape index: {}]
  %s6 = inlined_call_operand.hbm [shape: f32[2,8], index: 6, kind: output, shape index: {}]
  %s7 = sld [smem:[#allocation0]]
  $region34: #{velocity_lstm_forward.1} parent=0
    _
  %s9 = ssub.s32 1, %s7
  %s10 = scalar_select 0, %s9, %s7
  %11 = sst [smem:[#allocation2]] %s5
  $region1: #{velocity_lstm_forward.1} parent=0
    #allocation3 [shape = 'u8[1024]{0}', space=vmem, size = 0x400, scoped, tag = 'output window, operand 0, single buffered']
    #allocation4 [shape = 's32[1]{0}', space=sflag, size = 0x4, scoped, tag = 'scoped memory for velocity_lstm_forward.1']
    %12 = vsyncpa [#allocation4], 0
    // Predicated region
    $region2: #{velocity_lstm_forward.1} parent=1 // pred_check
      _
    $region3: #{velocity_lstm_forward.1} parent=1 // pred_check_branch
      %14 = sbr.rel (0) target = $region5
    $region4: #{velocity_lstm_forward.1} parent=1 // pred_region
      _
    $region5: #{velocity_lstm_forward.1} parent=1 // pred_fallthru
      _
    // Predicated region
    $region6: #{velocity_lstm_forward.1} parent=1 // pred_check
      _
    $region7: #{velocity_lstm_forward.1} parent=1 // pred_check_branch
      %16 = sbr.rel (0) target = $region9
    $region8: #{velocity_lstm_forward.1} parent=1 // pred_region
      _
    $region9: #{velocity_lstm_forward.1} parent=1 // pred_fallthru
      _
    // Predicated region
    $region10: #{velocity_lstm_forward.1} parent=1 // pred_check
      _
    $region11: #{velocity_lstm_forward.1} parent=1 // pred_check_branch
      %18 = sbr.rel (0) target = $region13
    $region12: #{velocity_lstm_forward.1} parent=1 // pred_region
      _
    $region13: #{velocity_lstm_forward.1} parent=1 // pred_fallthru
      _
    // Predicated region
    $region14: #{velocity_lstm_forward.1} parent=1 // pred_check
      _
    $region15: #{velocity_lstm_forward.1} parent=1 // pred_check_branch
      %20 = sbr.rel (0) target = $region17
    $region16: #{velocity_lstm_forward.1} parent=1 // pred_region
      _
    $region17: #{velocity_lstm_forward.1} parent=1 // pred_fallthru
      _
    // Predicated region
    $region18: #{velocity_lstm_forward.1} parent=1 // pred_check
      _
    $region19: #{velocity_lstm_forward.1} parent=1 // pred_check_branch
      %22 = sbr.rel (0) target = $region21
    $region20: #{velocity_lstm_forward.1} parent=1 // pred_region
      _
    $region21: #{velocity_lstm_forward.1} parent=1 // pred_fallthru
      _
    // Predicated region
    $region22: #{velocity_lstm_forward.1} parent=1 // pred_check
      _
    $region23: #{velocity_lstm_forward.1} parent=1 // pred_check_branch
      %24 = sbr.rel (0) target = $region25
    $region24: #{velocity_lstm_forward.1} parent=1 // pred_region
      _
    $region25: #{velocity_lstm_forward.1} parent=1 // pred_fallthru
      _
    %v25 = vld [vmem:[%s0] sm:$0xff]
    %v26 = vld [vmem:[%s0 + $0x8] sm:$0xff]
    %v27 = vld [vmem:[%s1] sm:$0xff]
    %v28 = vld [vmem:[%s1 + $0x8] sm:$0xff]
    %v29 = vld [vmem:[%s1 + $0x10] sm:$0xff]
    %v30 = vld [vmem:[%s1 + $0x18] sm:$0xff]
    %v31 = vld [vmem:[%s1 + $0x20] sm:$0xff]
    %v32 = vld [vmem:[%s1 + $0x28] sm:$0xff]
    %v33 = vld [vmem:[%s1 + $0x30] sm:$0xff]
    %v34 = vld [vmem:[%s1 + $0x38] sm:$0xff]
    %v35 = vld [vmem:[%s1 + $0x40] sm:$0xff]
    %v36 = vld [vmem:[%s1 + $0x48] sm:$0xff]
    %v37 = vld [vmem:[%s1 + $0x50] sm:$0xff]
    %v38 = vld [vmem:[%s1 + $0x58] sm:$0xff]
    %v39 = vld [vmem:[%s1 + $0x60] sm:$0xff]
    %v40 = vld [vmem:[%s1 + $0x68] sm:$0xff]
    %v41 = vld [vmem:[%s1 + $0x70] sm:$0xff]
    %v42 = vld [vmem:[%s1 + $0x78] sm:$0xff]
    %v43 = vld [vmem:[%s3] sm:$0x3]
    %v45 = vlaneseq
    %v46 = vshrl.u32 %v45, 7
    %v47 = vsub.s32 0, %v46
    %v48 = vrot.slane %v43, %v47
    %v49 = vlaneseq
    %v50 = vshrl.u32 %v49, 7
    %v51 = vsub.s32 1, %v50
    %v52 = vrot.slane %v43, %v51
    %vm55 = vcmask 523264
    %v57 = vsel %vm55, %v25, 0
    %v60 = vsel %vm55, %v26, 0
    %62 = vmatprep.subr.mxu0 0.0
    %63 = vmatpush1.msra.mxu0 0.0
    %64 = vmatprep.subr.mxu0 0.0
    %65 = vmatpush1.msra.mxu0 0.0
    %66 = vmatprep.subr.mxu0 0.0
    %67 = vmatpush1.msra.mxu0 0.0
    %68 = vmatprep.subr.mxu0 0.0
    %69 = vmatpush1.msra.mxu0 0.0
    %70 = vmatprep.subr.mxu0 0.0
    %71 = vmatpush1.msra.mxu0 0.0
    %72 = vmatprep.subr.mxu0 0.0
    %73 = vmatpush1.msra.mxu0 0.0
    %74 = vmatprep.subr.mxu0 0.0
    %75 = vmatpush1.msra.mxu0 0.0
    %76 = vmatprep.subr.mxu0 0.0
    %77 = vmatpush1.msra.mxu0 0.0
    %78 = vmatprep.subr.mxu0 %v42
    %79 = vmatpush1.msra.mxu0 %v41
    %80 = vmatprep.subr.mxu0 %v40
    %81 = vmatpush1.msra.mxu0 %v39
    %82 = vmatprep.subr.mxu0 %v38
    %83 = vmatpush1.msra.mxu0 %v37
    %84 = vmatprep.subr.mxu0 %v36
    %85 = vmatpush1.msra.mxu0 %v35
    %86 = vmatprep.subr.mxu0 %v34
    %87 = vmatpush1.msra.mxu0 %v33
    %88 = vmatprep.subr.mxu0 %v32
    %89 = vmatpush1.msra.mxu0 %v31
    %90 = vmatprep.subr.mxu0 %v30
    %91 = vmatpush1.msra.mxu0 %v29
    %92 = vmatprep.subr.mxu0 %v28
    %93 = vmatpush1.msra.mxu0 %v27
    %94 = vmatprep.subr.mxu0 0.0
    %95 = vmatpush2.msra.mxu0 0.0
    %96 = vmatprep.subr.mxu0 0.0
    %97 = vmatpush2.msra.mxu0 0.0
    %98 = vmatprep.subr.mxu0 0.0
    %99 = vmatpush2.msra.mxu0 0.0
    %100 = vmatprep.subr.mxu0 0.0
    %101 = vmatpush2.msra.mxu0 0.0
    %102 = vmatprep.subr.mxu0 0.0
    %103 = vmatpush2.msra.mxu0 0.0
    %104 = vmatprep.subr.mxu0 0.0
    %105 = vmatpush2.msra.mxu0 0.0
    %106 = vmatprep.subr.mxu0 0.0
    %107 = vmatpush2.msra.mxu0 0.0
    %108 = vmatprep.subr.mxu0 0.0
    %109 = vmatpush2.msra.mxu0 0.0
    %110 = vmatprep.subr.mxu0 0.0
    %111 = vmatpush2.msra.mxu0 0.0
    %112 = vmatprep.subr.mxu0 0.0
    %113 = vmatpush2.msra.mxu0 0.0
    %114 = vmatprep.subr.mxu0 0.0
    %115 = vmatpush2.msra.mxu0 0.0
    %116 = vmatprep.subr.mxu0 0.0
    %117 = vmatpush2.msra.mxu0 0.0
    %118 = vmatprep.subr.mxu0 0.0
    %119 = vmatpush2.msra.mxu0 0.0
    %120 = vmatprep.subr.mxu0 0.0
    %121 = vmatpush2.msra.mxu0 0.0
    %122 = vmatprep.subr.mxu0 0.0
    %123 = vmatpush2.msra.mxu0 0.0
    %124 = vmatprep.subr.mxu0 0.0
    %125 = vmatpush2.msra.mxu0 0.0
    %126 = vmatprep.mubr.f32.mxu0 0.0
    %127 = vmatmul.mubr.f32.gmra.mxu0 %v57
    %v128 = vpop.f32.mrf.mxu0
    %v129 = vadd.f32 %v48, %v128
    %v130 = vpop.f32.mrf.mxu0
    %v131 = vadd.f32 %v52, %v130
    %132 = vmatprep.mubr.f32.mxu0 0.0
    %133 = vmatmul.mubr.f32.gmra.mxu0 %v60
    %v134 = vpop.f32.mrf.mxu0
    %v135 = vadd.f32 %v48, %v134
    %v136 = vpop.f32.mrf.mxu0
    %v137 = vadd.f32 %v52, %v136
    %138 = vdwg.mxu0
    %v139 = vld [vmem:[%s2] sm:$0xff]
    %v140 = vld [vmem:[%s2 + $0x8] sm:$0xff]
    %v141 = vld [vmem:[%s2 + $0x10] sm:$0xff]
    %v142 = vld [vmem:[%s2 + $0x18] sm:$0xff]
    %v143 = vld [vmem:[%s2 + $0x20] sm:$0xff]
    %v144 = vld [vmem:[%s2 + $0x28] sm:$0xff]
    %v145 = vld [vmem:[%s2 + $0x30] sm:$0xff]
    %v146 = vld [vmem:[%s2 + $0x38] sm:$0xff]
    %v147 = vld [vmem:[%s2 + $0x40] sm:$0xff]
    %v148 = vld [vmem:[%s2 + $0x48] sm:$0xff]
    %v149 = vld [vmem:[%s2 + $0x50] sm:$0xff]
    %v150 = vld [vmem:[%s2 + $0x58] sm:$0xff]
    %v151 = vld [vmem:[%s2 + $0x60] sm:$0xff]
    %v152 = vld [vmem:[%s2 + $0x68] sm:$0xff]
    %v153 = vld [vmem:[%s2 + $0x70] sm:$0xff]
    %v154 = vld [vmem:[%s2 + $0x78] sm:$0xff]
    %v155 = vld [vmem:[%s4] sm:$0x1]
    %v157 = vsel %vm55, 0.0, 0
    %159 = vmatprep.subr.mxu0 0.0
    %160 = vmatpush1.msra.mxu0 0.0
    %161 = vmatprep.subr.mxu0 0.0
    %162 = vmatpush1.msra.mxu0 0.0
    %163 = vmatprep.subr.mxu0 0.0
    %164 = vmatpush1.msra.mxu0 0.0
    %165 = vmatprep.subr.mxu0 0.0
    %166 = vmatpush1.msra.mxu0 0.0
    %167 = vmatprep.subr.mxu0 0.0
    %168 = vmatpush1.msra.mxu0 0.0
    %169 = vmatprep.subr.mxu0 0.0
    %170 = vmatpush1.msra.mxu0 0.0
    %171 = vmatprep.subr.mxu0 0.0
    %172 = vmatpush1.msra.mxu0 0.0
    %173 = vmatprep.subr.mxu0 0.0
    %174 = vmatpush1.msra.mxu0 0.0
    %175 = vmatprep.subr.mxu0 %v154
    %176 = vmatpush1.msra.mxu0 %v153
    %177 = vmatprep.subr.mxu0 %v152
    %178 = vmatpush1.msra.mxu0 %v151
    %179 = vmatprep.subr.mxu0 %v150
    %180 = vmatpush1.msra.mxu0 %v149
    %181 = vmatprep.subr.mxu0 %v148
    %182 = vmatpush1.msra.mxu0 %v147
    %183 = vmatprep.subr.mxu0 %v146
    %184 = vmatpush1.msra.mxu0 %v145
    %185 = vmatprep.subr.mxu0 %v144
    %186 = vmatpush1.msra.mxu0 %v143
    %187 = vmatprep.subr.mxu0 %v142
    %188 = vmatpush1.msra.mxu0 %v141
    %189 = vmatprep.subr.mxu0 %v140
    %190 = vmatpush1.msra.mxu0 %v139
    %191 = vmatprep.subr.mxu0 0.0
    %192 = vmatpush2.msra.mxu0 0.0
    %193 = vmatprep.subr.mxu0 0.0
    %194 = vmatpush2.msra.mxu0 0.0
    %195 = vmatprep.subr.mxu0 0.0
    %196 = vmatpush2.msra.mxu0 0.0
    %197 = vmatprep.subr.mxu0 0.0
    %198 = vmatpush2.msra.mxu0 0.0
    %199 = vmatprep.subr.mxu0 0.0
    %200 = vmatpush2.msra.mxu0 0.0
    %201 = vmatprep.subr.mxu0 0.0
    %202 = vmatpush2.msra.mxu0 0.0
    %203 = vmatprep.subr.mxu0 0.0
    %204 = vmatpush2.msra.mxu0 0.0
    %205 = vmatprep.subr.mxu0 0.0
    %206 = vmatpush2.msra.mxu0 0.0
    %207 = vmatprep.subr.mxu0 0.0
    %208 = vmatpush2.msra.mxu0 0.0
    %209 = vmatprep.subr.mxu0 0.0
    %210 = vmatpush2.msra.mxu0 0.0
    %211 = vmatprep.subr.mxu0 0.0
    %212 = vmatpush2.msra.mxu0 0.0
    %213 = vmatprep.subr.mxu0 0.0
    %214 = vmatpush2.msra.mxu0 0.0
    %215 = vmatprep.subr.mxu0 0.0
    %216 = vmatpush2.msra.mxu0 0.0
    %217 = vmatprep.subr.mxu0 0.0
    %218 = vmatpush2.msra.mxu0 0.0
    %219 = vmatprep.subr.mxu0 0.0
    %220 = vmatpush2.msra.mxu0 0.0
    %221 = vmatprep.subr.mxu0 0.0
    %222 = vmatpush2.msra.mxu0 0.0
    %223 = vmatprep.mubr.f32.mxu0 0.0
    %224 = vmatmul.mubr.f32.gmra.mxu0 %v157
    %v225 = vpop.f32.mrf.mxu0
    %v226 = vadd.f32 0.0, %v225
    %v227 = vpop.f32.mrf.mxu0
    %v228 = vadd.f32 0.0, %v227
    %229 = vdwg.mxu0
    %v230 = vadd.f32 %v129, %v226
    %v231 = vadd.f32 %v131, %v228
    %v232 = vxor.u32 %v230, 2147483648
    %v233 = vxor.u32 %v231, 2147483648
    %v234 = vmul.f32 %v232, 1.442695
    %v235 = vpow.pop %v234
    %v236 = vmul.f32 %v233, 1.442695
    %v237 = vpow.pop %v236
    %v238 = vadd.f32 %v235, 1.0
    %v239 = vadd.f32 %v237, 1.0
    %v240 = vrcp.pop %v238
    %v241 = vmul.f32 1.0, %v240
    %v242 = vrcp.pop %v239
    %v243 = vmul.f32 1.0, %v242
    %v244 = vtanh.pop %v231
    %v245 = vmul.f32 %v241, 0.0
    %247 = vrot.lane.b32.xlu0 %v244, 64
    %v248 = vpop.permute.xlu0 %247
    %v250 = vmul.f32 %v241, %v248
    %252 = vrot.lane.b32.xlu0 %v250, 64
    %v253 = vpop.permute.xlu0 %252
    %v255 = vadd.f32 %v245, %v253
    %v256 = vtanh.pop %v255
    %258 = vrot.lane.b32.xlu0 %v256, 64
    %v259 = vpop.permute.xlu0 %258
    %v261 = vmul.f32 %v243, %v259
    %v263 = vsel %vm55, %v261, 0
    %265 = vmatprep.subr.mxu0 0.0
    %266 = vmatpush1.msra.mxu0 0.0
    %267 = vmatprep.subr.mxu0 0.0
    %268 = vmatpush1.msra.mxu0 0.0
    %269 = vmatprep.subr.mxu0 0.0
    %270 = vmatpush1.msra.mxu0 0.0
    %271 = vmatprep.subr.mxu0 0.0
    %272 = vmatpush1.msra.mxu0 0.0
    %273 = vmatprep.subr.mxu0 0.0
    %274 = vmatpush1.msra.mxu0 0.0
    %275 = vmatprep.subr.mxu0 0.0
    %276 = vmatpush1.msra.mxu0 0.0
    %277 = vmatprep.subr.mxu0 0.0
    %278 = vmatpush1.msra.mxu0 0.0
    %279 = vmatprep.subr.mxu0 0.0
    %280 = vmatpush1.msra.mxu0 0.0
    %281 = vmatprep.subr.mxu0 %v154
    %282 = vmatpush1.msra.mxu0 %v153
    %283 = vmatprep.subr.mxu0 %v152
    %284 = vmatpush1.msra.mxu0 %v151
    %285 = vmatprep.subr.mxu0 %v150
    %286 = vmatpush1.msra.mxu0 %v149
    %287 = vmatprep.subr.mxu0 %v148
    %288 = vmatpush1.msra.mxu0 %v147
    %289 = vmatprep.subr.mxu0 %v146
    %290 = vmatpush1.msra.mxu0 %v145
    %291 = vmatprep.subr.mxu0 %v144
    %292 = vmatpush1.msra.mxu0 %v143
    %293 = vmatprep.subr.mxu0 %v142
    %294 = vmatpush1.msra.mxu0 %v141
    %295 = vmatprep.subr.mxu0 %v140
    %296 = vmatpush1.msra.mxu0 %v139
    %297 = vmatprep.subr.mxu0 0.0
    %298 = vmatpush2.msra.mxu0 0.0
    %299 = vmatprep.subr.mxu0 0.0
    %300 = vmatpush2.msra.mxu0 0.0
    %301 = vmatprep.subr.mxu0 0.0
    %302 = vmatpush2.msra.mxu0 0.0
    %303 = vmatprep.subr.mxu0 0.0
    %304 = vmatpush2.msra.mxu0 0.0
    %305 = vmatprep.subr.mxu0 0.0
    %306 = vmatpush2.msra.mxu0 0.0
    %307 = vmatprep.subr.mxu0 0.0
    %308 = vmatpush2.msra.mxu0 0.0
    %309 = vmatprep.subr.mxu0 0.0
    %310 = vmatpush2.msra.mxu0 0.0
    %311 = vmatprep.subr.mxu0 0.0
    %312 = vmatpush2.msra.mxu0 0.0
    %313 = vmatprep.subr.mxu0 0.0
    %314 = vmatpush2.msra.mxu0 0.0
    %315 = vmatprep.subr.mxu0 0.0
    %316 = vmatpush2.msra.mxu0 0.0
    %317 = vmatprep.subr.mxu0 0.0
    %318 = vmatpush2.msra.mxu0 0.0
    %319 = vmatprep.subr.mxu0 0.0
    %320 = vmatpush2.msra.mxu0 0.0
    %321 = vmatprep.subr.mxu0 0.0
    %322 = vmatpush2.msra.mxu0 0.0
    %323 = vmatprep.subr.mxu0 0.0
    %324 = vmatpush2.msra.mxu0 0.0
    %325 = vmatprep.subr.mxu0 0.0
    %326 = vmatpush2.msra.mxu0 0.0
    %327 = vmatprep.subr.mxu0 0.0
    %328 = vmatpush2.msra.mxu0 0.0
    %329 = vmatprep.mubr.f32.mxu0 0.0
    %330 = vmatmul.mubr.f32.gmra.mxu0 %v263
    %v331 = vpop.f32.mrf.mxu0
    %v332 = vadd.f32 0.0, %v331
    %v333 = vpop.f32.mrf.mxu0
    %v334 = vadd.f32 0.0, %v333
    %335 = vdwg.mxu0
    %v338 = vrot.slane %v332, 6
    %v339 = vrot.slane %v334, 6
    %v342 = vadd.f32 %v129, %v338
    %v343 = vadd.f32 %v131, %v339
    %v344 = vxor.u32 %v342, 2147483648
    %v345 = vxor.u32 %v343, 2147483648
    %v346 = vmul.f32 %v344, 1.442695
    %v347 = vpow.pop %v346
    %v348 = vmul.f32 %v345, 1.442695
    %v349 = vpow.pop %v348
    %v350 = vadd.f32 %v347, 1.0
    %v351 = vadd.f32 %v349, 1.0
    %v352 = vrcp.pop %v350
    %v353 = vmul.f32 1.0, %v352
    %v354 = vrcp.pop %v351
    %v355 = vmul.f32 1.0, %v354
    %v356 = vtanh.pop %v343
    %v358 = vrot.slane %v255, 6
    %v360 = vmul.f32 %v353, %v358
    %362 = vrot.lane.b32.xlu0 %v356, 64
    %v363 = vpop.permute.xlu0 %362
    %v365 = vmul.f32 %v353, %v363
    %367 = vrot.lane.b32.xlu0 %v365, 64
    %v368 = vpop.permute.xlu0 %367
    %v370 = vadd.f32 %v360, %v368
    %v371 = vtanh.pop %v370
    %373 = vrot.lane.b32.xlu0 %v371, 64
    %v374 = vpop.permute.xlu0 %373
    %v376 = vmul.f32 %v355, %v374
    %v378 = vrot.slane %v376, 2
    %v379 = vsel %vm55, %v378, 0
    %381 = vmatprep.subr.mxu0 0.0
    %382 = vmatpush1.msra.mxu0 0.0
    %383 = vmatprep.subr.mxu0 0.0
    %384 = vmatpush1.msra.mxu0 0.0
    %385 = vmatprep.subr.mxu0 0.0
    %386 = vmatpush1.msra.mxu0 0.0
    %387 = vmatprep.subr.mxu0 0.0
    %388 = vmatpush1.msra.mxu0 0.0
    %389 = vmatprep.subr.mxu0 0.0
    %390 = vmatpush1.msra.mxu0 0.0
    %391 = vmatprep.subr.mxu0 0.0
    %392 = vmatpush1.msra.mxu0 0.0
    %393 = vmatprep.subr.mxu0 0.0
    %394 = vmatpush1.msra.mxu0 0.0
    %395 = vmatprep.subr.mxu0 0.0
    %396 = vmatpush1.msra.mxu0 0.0
    %397 = vmatprep.subr.mxu0 %v154
    %398 = vmatpush1.msra.mxu0 %v153
    %399 = vmatprep.subr.mxu0 %v152
    %400 = vmatpush1.msra.mxu0 %v151
    %401 = vmatprep.subr.mxu0 %v150
    %402 = vmatpush1.msra.mxu0 %v149
    %403 = vmatprep.subr.mxu0 %v148
    %404 = vmatpush1.msra.mxu0 %v147
    %405 = vmatprep.subr.mxu0 %v146
    %406 = vmatpush1.msra.mxu0 %v145
    %407 = vmatprep.subr.mxu0 %v144
    %408 = vmatpush1.msra.mxu0 %v143
    %409 = vmatprep.subr.mxu0 %v142
    %410 = vmatpush1.msra.mxu0 %v141
    %411 = vmatprep.subr.mxu0 %v140
    %412 = vmatpush1.msra.mxu0 %v139
    %413 = vmatprep.subr.mxu0 0.0
    %414 = vmatpush2.msra.mxu0 0.0
    %415 = vmatprep.subr.mxu0 0.0
    %416 = vmatpush2.msra.mxu0 0.0
    %417 = vmatprep.subr.mxu0 0.0
    %418 = vmatpush2.msra.mxu0 0.0
    %419 = vmatprep.subr.mxu0 0.0
    %420 = vmatpush2.msra.mxu0 0.0
    %421 = vmatprep.subr.mxu0 0.0
    %422 = vmatpush2.msra.mxu0 0.0
    %423 = vmatprep.subr.mxu0 0.0
    %424 = vmatpush2.msra.mxu0 0.0
    %425 = vmatprep.subr.mxu0 0.0
    %426 = vmatpush2.msra.mxu0 0.0
    %427 = vmatprep.subr.mxu0 0.0
    %428 = vmatpush2.msra.mxu0 0.0
    %429 = vmatprep.subr.mxu0 0.0
    %430 = vmatpush2.msra.mxu0 0.0
    %431 = vmatprep.subr.mxu0 0.0
    %432 = vmatpush2.msra.mxu0 0.0
    %433 = vmatprep.subr.mxu0 0.0
    %434 = vmatpush2.msra.mxu0 0.0
    %435 = vmatprep.subr.mxu0 0.0
    %436 = vmatpush2.msra.mxu0 0.0
    %437 = vmatprep.subr.mxu0 0.0
    %438 = vmatpush2.msra.mxu0 0.0
    %439 = vmatprep.subr.mxu0 0.0
    %440 = vmatpush2.msra.mxu0 0.0
    %441 = vmatprep.subr.mxu0 0.0
    %442 = vmatpush2.msra.mxu0 0.0
    %443 = vmatprep.subr.mxu0 0.0
    %444 = vmatpush2.msra.mxu0 0.0
    %445 = vmatprep.mubr.f32.mxu0 0.0
    %446 = vmatmul.mubr.f32.gmra.mxu0 %v379
    %v447 = vpop.f32.mrf.mxu0
    %v448 = vadd.f32 0.0, %v447
    %v449 = vpop.f32.mrf.mxu0
    %v450 = vadd.f32 0.0, %v449
    %451 = vdwg.mxu0
    %v454 = vrot.slane %v448, 4
    %v455 = vrot.slane %v450, 4
    %v458 = vadd.f32 %v129, %v454
    %v459 = vadd.f32 %v131, %v455
    %v460 = vxor.u32 %v458, 2147483648
    %v461 = vxor.u32 %v459, 2147483648
    %v462 = vmul.f32 %v460, 1.442695
    %v463 = vpow.pop %v462
    %v464 = vmul.f32 %v461, 1.442695
    %v465 = vpow.pop %v464
    %v466 = vadd.f32 %v463, 1.0
    %v467 = vadd.f32 %v465, 1.0
    %v468 = vrcp.pop %v466
    %v469 = vmul.f32 1.0, %v468
    %v470 = vrcp.pop %v467
    %v471 = vmul.f32 1.0, %v470
    %v472 = vtanh.pop %v459
    %v474 = vrot.slane %v370, 6
    %v476 = vmul.f32 %v469, %v474
    %478 = vrot.lane.b32.xlu0 %v472, 64
    %v479 = vpop.permute.xlu0 %478
    %v481 = vmul.f32 %v469, %v479
    %483 = vrot.lane.b32.xlu0 %v481, 64
    %v484 = vpop.permute.xlu0 %483
    %v486 = vadd.f32 %v476, %v484
    %v487 = vtanh.pop %v486
    %489 = vrot.lane.b32.xlu0 %v487, 64
    %v490 = vpop.permute.xlu0 %489
    %v492 = vmul.f32 %v471, %v490
    %v494 = vrot.slane %v492, 4
    %v495 = vsel %vm55, %v494, 0
    %497 = vmatprep.subr.mxu0 0.0
    %498 = vmatpush1.msra.mxu0 0.0
    %499 = vmatprep.subr.mxu0 0.0
    %500 = vmatpush1.msra.mxu0 0.0
    %501 = vmatprep.subr.mxu0 0.0
    %502 = vmatpush1.msra.mxu0 0.0
    %503 = vmatprep.subr.mxu0 0.0
    %504 = vmatpush1.msra.mxu0 0.0
    %505 = vmatprep.subr.mxu0 0.0
    %506 = vmatpush1.msra.mxu0 0.0
    %507 = vmatprep.subr.mxu0 0.0
    %508 = vmatpush1.msra.mxu0 0.0
    %509 = vmatprep.subr.mxu0 0.0
    %510 = vmatpush1.msra.mxu0 0.0
    %511 = vmatprep.subr.mxu0 0.0
    %512 = vmatpush1.msra.mxu0 0.0
    %513 = vmatprep.subr.mxu0 %v154
    %514 = vmatpush1.msra.mxu0 %v153
    %515 = vmatprep.subr.mxu0 %v152
    %516 = vmatpush1.msra.mxu0 %v151
    %517 = vmatprep.subr.mxu0 %v150
    %518 = vmatpush1.msra.mxu0 %v149
    %519 = vmatprep.subr.mxu0 %v148
    %520 = vmatpush1.msra.mxu0 %v147
    %521 = vmatprep.subr.mxu0 %v146
    %522 = vmatpush1.msra.mxu0 %v145
    %523 = vmatprep.subr.mxu0 %v144
    %524 = vmatpush1.msra.mxu0 %v143
    %525 = vmatprep.subr.mxu0 %v142
    %526 = vmatpush1.msra.mxu0 %v141
    %527 = vmatprep.subr.mxu0 %v140
    %528 = vmatpush1.msra.mxu0 %v139
    %529 = vmatprep.subr.mxu0 0.0
    %530 = vmatpush2.msra.mxu0 0.0
    %531 = vmatprep.subr.mxu0 0.0
    %532 = vmatpush2.msra.mxu0 0.0
    %533 = vmatprep.subr.mxu0 0.0
    %534 = vmatpush2.msra.mxu0 0.0
    %535 = vmatprep.subr.mxu0 0.0
    %536 = vmatpush2.msra.mxu0 0.0
    %537 = vmatprep.subr.mxu0 0.0
    %538 = vmatpush2.msra.mxu0 0.0
    %539 = vmatprep.subr.mxu0 0.0
    %540 = vmatpush2.msra.mxu0 0.0
    %541 = vmatprep.subr.mxu0 0.0
    %542 = vmatpush2.msra.mxu0 0.0
    %543 = vmatprep.subr.mxu0 0.0
    %544 = vmatpush2.msra.mxu0 0.0
    %545 = vmatprep.subr.mxu0 0.0
    %546 = vmatpush2.msra.mxu0 0.0
    %547 = vmatprep.subr.mxu0 0.0
    %548 = vmatpush2.msra.mxu0 0.0
    %549 = vmatprep.subr.mxu0 0.0
    %550 = vmatpush2.msra.mxu0 0.0
    %551 = vmatprep.subr.mxu0 0.0
    %552 = vmatpush2.msra.mxu0 0.0
    %553 = vmatprep.subr.mxu0 0.0
    %554 = vmatpush2.msra.mxu0 0.0
    %555 = vmatprep.subr.mxu0 0.0
    %556 = vmatpush2.msra.mxu0 0.0
    %557 = vmatprep.subr.mxu0 0.0
    %558 = vmatpush2.msra.mxu0 0.0
    %559 = vmatprep.subr.mxu0 0.0
    %560 = vmatpush2.msra.mxu0 0.0
    %561 = vmatprep.mubr.f32.mxu0 0.0
    %562 = vmatmul.mubr.f32.gmra.mxu0 %v495
    %v563 = vpop.f32.mrf.mxu0
    %v564 = vadd.f32 0.0, %v563
    %v565 = vpop.f32.mrf.mxu0
    %v566 = vadd.f32 0.0, %v565
    %567 = vdwg.mxu0
    %v570 = vrot.slane %v564, 2
    %v571 = vrot.slane %v566, 2
    %v574 = vadd.f32 %v129, %v570
    %v575 = vadd.f32 %v131, %v571
    %v576 = vxor.u32 %v574, 2147483648
    %v577 = vxor.u32 %v575, 2147483648
    %v578 = vmul.f32 %v576, 1.442695
    %v579 = vpow.pop %v578
    %v580 = vmul.f32 %v577, 1.442695
    %v581 = vpow.pop %v580
    %v582 = vadd.f32 %v579, 1.0
    %v583 = vadd.f32 %v581, 1.0
    %v584 = vrcp.pop %v582
    %v585 = vmul.f32 1.0, %v584
    %v586 = vrcp.pop %v583
    %v587 = vmul.f32 1.0, %v586
    %v588 = vtanh.pop %v575
    %v590 = vrot.slane %v486, 6
    %v592 = vmul.f32 %v585, %v590
    %594 = vrot.lane.b32.xlu0 %v588, 64
    %v595 = vpop.permute.xlu0 %594
    %v597 = vmul.f32 %v585, %v595
    %599 = vrot.lane.b32.xlu0 %v597, 64
    %v600 = vpop.permute.xlu0 %599
    %v602 = vadd.f32 %v592, %v600
    %v603 = vtanh.pop %v602
    %605 = vrot.lane.b32.xlu0 %v603, 64
    %v606 = vpop.permute.xlu0 %605
    %v608 = vmul.f32 %v587, %v606
    %v610 = vrot.slane %v608, 6
    %v611 = vsel %vm55, %v610, 0
    %613 = vmatprep.subr.mxu0 0.0
    %614 = vmatpush1.msra.mxu0 0.0
    %615 = vmatprep.subr.mxu0 0.0
    %616 = vmatpush1.msra.mxu0 0.0
    %617 = vmatprep.subr.mxu0 0.0
    %618 = vmatpush1.msra.mxu0 0.0
    %619 = vmatprep.subr.mxu0 0.0
    %620 = vmatpush1.msra.mxu0 0.0
    %621 = vmatprep.subr.mxu0 0.0
    %622 = vmatpush1.msra.mxu0 0.0
    %623 = vmatprep.subr.mxu0 0.0
    %624 = vmatpush1.msra.mxu0 0.0
    %625 = vmatprep.subr.mxu0 0.0
    %626 = vmatpush1.msra.mxu0 0.0
    %627 = vmatprep.subr.mxu0 0.0
    %628 = vmatpush1.msra.mxu0 0.0
    %629 = vmatprep.subr.mxu0 %v154
    %630 = vmatpush1.msra.mxu0 %v153
    %631 = vmatprep.subr.mxu0 %v152
    %632 = vmatpush1.msra.mxu0 %v151
    %633 = vmatprep.subr.mxu0 %v150
    %634 = vmatpush1.msra.mxu0 %v149
    %635 = vmatprep.subr.mxu0 %v148
    %636 = vmatpush1.msra.mxu0 %v147
    %637 = vmatprep.subr.mxu0 %v146
    %638 = vmatpush1.msra.mxu0 %v145
    %639 = vmatprep.subr.mxu0 %v144
    %640 = vmatpush1.msra.mxu0 %v143
    %641 = vmatprep.subr.mxu0 %v142
    %642 = vmatpush1.msra.mxu0 %v141
    %643 = vmatprep.subr.mxu0 %v140
    %644 = vmatpush1.msra.mxu0 %v139
    %645 = vmatprep.subr.mxu0 0.0
    %646 = vmatpush2.msra.mxu0 0.0
    %647 = vmatprep.subr.mxu0 0.0
    %648 = vmatpush2.msra.mxu0 0.0
    %649 = vmatprep.subr.mxu0 0.0
    %650 = vmatpush2.msra.mxu0 0.0
    %651 = vmatprep.subr.mxu0 0.0
    %652 = vmatpush2.msra.mxu0 0.0
    %653 = vmatprep.subr.mxu0 0.0
    %654 = vmatpush2.msra.mxu0 0.0
    %655 = vmatprep.subr.mxu0 0.0
    %656 = vmatpush2.msra.mxu0 0.0
    %657 = vmatprep.subr.mxu0 0.0
    %658 = vmatpush2.msra.mxu0 0.0
    %659 = vmatprep.subr.mxu0 0.0
    %660 = vmatpush2.msra.mxu0 0.0
    %661 = vmatprep.subr.mxu0 0.0
    %662 = vmatpush2.msra.mxu0 0.0
    %663 = vmatprep.subr.mxu0 0.0
    %664 = vmatpush2.msra.mxu0 0.0
    %665 = vmatprep.subr.mxu0 0.0
    %666 = vmatpush2.msra.mxu0 0.0
    %667 = vmatprep.subr.mxu0 0.0
    %668 = vmatpush2.msra.mxu0 0.0
    %669 = vmatprep.subr.mxu0 0.0
    %670 = vmatpush2.msra.mxu0 0.0
    %671 = vmatprep.subr.mxu0 0.0
    %672 = vmatpush2.msra.mxu0 0.0
    %673 = vmatprep.subr.mxu0 0.0
    %674 = vmatpush2.msra.mxu0 0.0
    %675 = vmatprep.subr.mxu0 0.0
    %676 = vmatpush2.msra.mxu0 0.0
    %677 = vmatprep.mubr.f32.mxu0 0.0
    %678 = vmatmul.mubr.f32.gmra.mxu0 %v611
    %v679 = vpop.f32.mrf.mxu0
    %v680 = vadd.f32 0.0, %v679
    %v681 = vpop.f32.mrf.mxu0
    %v682 = vadd.f32 0.0, %v681
    %683 = vdwg.mxu0
    %v684 = vadd.f32 %v135, %v680
    %v685 = vadd.f32 %v137, %v682
    %v686 = vxor.u32 %v684, 2147483648
    %v687 = vxor.u32 %v685, 2147483648
    %v688 = vmul.f32 %v686, 1.442695
    %v689 = vpow.pop %v688
    %v690 = vmul.f32 %v687, 1.442695
    %v691 = vpow.pop %v690
    %v692 = vadd.f32 %v689, 1.0
    %v693 = vadd.f32 %v691, 1.0
    %v694 = vrcp.pop %v692
    %v695 = vmul.f32 1.0, %v694
    %v696 = vrcp.pop %v693
    %v697 = vmul.f32 1.0, %v696
    %v698 = vtanh.pop %v685
    %v700 = vrot.slane %v602, 6
    %v702 = vmul.f32 %v695, %v700
    %704 = vrot.lane.b32.xlu0 %v698, 64
    %v705 = vpop.permute.xlu0 %704
    %v707 = vmul.f32 %v695, %v705
    %709 = vrot.lane.b32.xlu0 %v707, 64
    %v710 = vpop.permute.xlu0 %709
    %v712 = vadd.f32 %v702, %v710
    %v713 = vtanh.pop %v712
    %715 = vrot.lane.b32.xlu0 %v713, 64
    %v716 = vpop.permute.xlu0 %715
    %v718 = vmul.f32 %v697, %v716
    %v720 = vsel %vm55, %v718, 0
    %722 = vmatprep.subr.mxu0 0.0
    %723 = vmatpush1.msra.mxu0 0.0
    %724 = vmatprep.subr.mxu0 0.0
    %725 = vmatpush1.msra.mxu0 0.0
    %726 = vmatprep.subr.mxu0 0.0
    %727 = vmatpush1.msra.mxu0 0.0
    %728 = vmatprep.subr.mxu0 0.0
    %729 = vmatpush1.msra.mxu0 0.0
    %730 = vmatprep.subr.mxu0 0.0
    %731 = vmatpush1.msra.mxu0 0.0
    %732 = vmatprep.subr.mxu0 0.0
    %733 = vmatpush1.msra.mxu0 0.0
    %734 = vmatprep.subr.mxu0 0.0
    %735 = vmatpush1.msra.mxu0 0.0
    %736 = vmatprep.subr.mxu0 0.0
    %737 = vmatpush1.msra.mxu0 0.0
    %738 = vmatprep.subr.mxu0 %v154
    %739 = vmatpush1.msra.mxu0 %v153
    %740 = vmatprep.subr.mxu0 %v152
    %741 = vmatpush1.msra.mxu0 %v151
    %742 = vmatprep.subr.mxu0 %v150
    %743 = vmatpush1.msra.mxu0 %v149
    %744 = vmatprep.subr.mxu0 %v148
    %745 = vmatpush1.msra.mxu0 %v147
    %746 = vmatprep.subr.mxu0 %v146
    %747 = vmatpush1.msra.mxu0 %v145
    %748 = vmatprep.subr.mxu0 %v144
    %749 = vmatpush1.msra.mxu0 %v143
    %750 = vmatprep.subr.mxu0 %v142
    %751 = vmatpush1.msra.mxu0 %v141
    %752 = vmatprep.subr.mxu0 %v140
    %753 = vmatpush1.msra.mxu0 %v139
    %754 = vmatprep.subr.mxu0 0.0
    %755 = vmatpush2.msra.mxu0 0.0
    %756 = vmatprep.subr.mxu0 0.0
    %757 = vmatpush2.msra.mxu0 0.0
    %758 = vmatprep.subr.mxu0 0.0
    %759 = vmatpush2.msra.mxu0 0.0
    %760 = vmatprep.subr.mxu0 0.0
    %761 = vmatpush2.msra.mxu0 0.0
    %762 = vmatprep.subr.mxu0 0.0
    %763 = vmatpush2.msra.mxu0 0.0
    %764 = vmatprep.subr.mxu0 0.0
    %765 = vmatpush2.msra.mxu0 0.0
    %766 = vmatprep.subr.mxu0 0.0
    %767 = vmatpush2.msra.mxu0 0.0
    %768 = vmatprep.subr.mxu0 0.0
    %769 = vmatpush2.msra.mxu0 0.0
    %770 = vmatprep.subr.mxu0 0.0
    %771 = vmatpush2.msra.mxu0 0.0
    %772 = vmatprep.subr.mxu0 0.0
    %773 = vmatpush2.msra.mxu0 0.0
    %774 = vmatprep.subr.mxu0 0.0
    %775 = vmatpush2.msra.mxu0 0.0
    %776 = vmatprep.subr.mxu0 0.0
    %777 = vmatpush2.msra.mxu0 0.0
    %778 = vmatprep.subr.mxu0 0.0
    %779 = vmatpush2.msra.mxu0 0.0
    %780 = vmatprep.subr.mxu0 0.0
    %781 = vmatpush2.msra.mxu0 0.0
    %782 = vmatprep.subr.mxu0 0.0
    %783 = vmatpush2.msra.mxu0 0.0
    %784 = vmatprep.subr.mxu0 0.0
    %785 = vmatpush2.msra.mxu0 0.0
    %786 = vmatprep.mubr.f32.mxu0 0.0
    %787 = vmatmul.mubr.f32.gmra.mxu0 %v720
    %v788 = vpop.f32.mrf.mxu0
    %v789 = vadd.f32 0.0, %v788
    %v790 = vpop.f32.mrf.mxu0
    %v791 = vadd.f32 0.0, %v790
    %792 = vdwg.mxu0
    %v795 = vrot.slane %v789, 6
    %v796 = vrot.slane %v791, 6
    %v799 = vadd.f32 %v135, %v795
    %v800 = vadd.f32 %v137, %v796
    %v801 = vxor.u32 %v799, 2147483648
    %v802 = vxor.u32 %v800, 2147483648
    %v803 = vmul.f32 %v801, 1.442695
    %v804 = vpow.pop %v803
    %v805 = vmul.f32 %v802, 1.442695
    %v806 = vpow.pop %v805
    %v807 = vadd.f32 %v804, 1.0
    %v808 = vadd.f32 %v806, 1.0
    %v809 = vrcp.pop %v807
    %v810 = vmul.f32 1.0, %v809
    %v811 = vrcp.pop %v808
    %v812 = vmul.f32 1.0, %v811
    %v813 = vtanh.pop %v800
    %v815 = vrot.slane %v712, 6
    %v817 = vmul.f32 %v810, %v815
    %819 = vrot.lane.b32.xlu0 %v813, 64
    %v820 = vpop.permute.xlu0 %819
    %v822 = vmul.f32 %v810, %v820
    %824 = vrot.lane.b32.xlu0 %v822, 64
    %v825 = vpop.permute.xlu0 %824
    %v827 = vadd.f32 %v817, %v825
    %v828 = vtanh.pop %v827
    %830 = vrot.lane.b32.xlu0 %v828, 64
    %v831 = vpop.permute.xlu0 %830
    %v833 = vmul.f32 %v812, %v831
    %v835 = vrot.slane %v833, 2
    %v836 = vsel %vm55, %v835, 0
    %838 = vmatprep.subr.mxu0 0.0
    %839 = vmatpush1.msra.mxu0 0.0
    %840 = vmatprep.subr.mxu0 0.0
    %841 = vmatpush1.msra.mxu0 0.0
    %842 = vmatprep.subr.mxu0 0.0
    %843 = vmatpush1.msra.mxu0 0.0
    %844 = vmatprep.subr.mxu0 0.0
    %845 = vmatpush1.msra.mxu0 0.0
    %846 = vmatprep.subr.mxu0 0.0
    %847 = vmatpush1.msra.mxu0 0.0
    %848 = vmatprep.subr.mxu0 0.0
    %849 = vmatpush1.msra.mxu0 0.0
    %850 = vmatprep.subr.mxu0 0.0
    %851 = vmatpush1.msra.mxu0 0.0
    %852 = vmatprep.subr.mxu0 0.0
    %853 = vmatpush1.msra.mxu0 0.0
    %854 = vmatprep.subr.mxu0 %v154
    %855 = vmatpush1.msra.mxu0 %v153
    %856 = vmatprep.subr.mxu0 %v152
    %857 = vmatpush1.msra.mxu0 %v151
    %858 = vmatprep.subr.mxu0 %v150
    %859 = vmatpush1.msra.mxu0 %v149
    %860 = vmatprep.subr.mxu0 %v148
    %861 = vmatpush1.msra.mxu0 %v147
    %862 = vmatprep.subr.mxu0 %v146
    %863 = vmatpush1.msra.mxu0 %v145
    %864 = vmatprep.subr.mxu0 %v144
    %865 = vmatpush1.msra.mxu0 %v143
    %866 = vmatprep.subr.mxu0 %v142
    %867 = vmatpush1.msra.mxu0 %v141
    %868 = vmatprep.subr.mxu0 %v140
    %869 = vmatpush1.msra.mxu0 %v139
    %870 = vmatprep.subr.mxu0 0.0
    %871 = vmatpush2.msra.mxu0 0.0
    %872 = vmatprep.subr.mxu0 0.0
    %873 = vmatpush2.msra.mxu0 0.0
    %874 = vmatprep.subr.mxu0 0.0
    %875 = vmatpush2.msra.mxu0 0.0
    %876 = vmatprep.subr.mxu0 0.0
    %877 = vmatpush2.msra.mxu0 0.0
    %878 = vmatprep.subr.mxu0 0.0
    %879 = vmatpush2.msra.mxu0 0.0
    %880 = vmatprep.subr.mxu0 0.0
    %881 = vmatpush2.msra.mxu0 0.0
    %882 = vmatprep.subr.mxu0 0.0
    %883 = vmatpush2.msra.mxu0 0.0
    %884 = vmatprep.subr.mxu0 0.0
    %885 = vmatpush2.msra.mxu0 0.0
    %886 = vmatprep.subr.mxu0 0.0
    %887 = vmatpush2.msra.mxu0 0.0
    %888 = vmatprep.subr.mxu0 0.0
    %889 = vmatpush2.msra.mxu0 0.0
    %890 = vmatprep.subr.mxu0 0.0
    %891 = vmatpush2.msra.mxu0 0.0
    %892 = vmatprep.subr.mxu0 0.0
    %893 = vmatpush2.msra.mxu0 0.0
    %894 = vmatprep.subr.mxu0 0.0
    %895 = vmatpush2.msra.mxu0 0.0
    %896 = vmatprep.subr.mxu0 0.0
    %897 = vmatpush2.msra.mxu0 0.0
    %898 = vmatprep.subr.mxu0 0.0
    %899 = vmatpush2.msra.mxu0 0.0
    %900 = vmatprep.subr.mxu0 0.0
    %901 = vmatpush2.msra.mxu0 0.0
    %902 = vmatprep.mubr.f32.mxu0 0.0
    %903 = vmatmul.mubr.f32.gmra.mxu0 %v836
    %v904 = vpop.f32.mrf.mxu0
    %v905 = vadd.f32 0.0, %v904
    %v906 = vpop.f32.mrf.mxu0
    %v907 = vadd.f32 0.0, %v906
    %908 = vdwg.mxu0
    %v911 = vrot.slane %v905, 4
    %v912 = vrot.slane %v907, 4
    %v915 = vadd.f32 %v135, %v911
    %v916 = vadd.f32 %v137, %v912
    %v917 = vxor.u32 %v915, 2147483648
    %v918 = vxor.u32 %v916, 2147483648
    %v919 = vmul.f32 %v917, 1.442695
    %v920 = vpow.pop %v919
    %v921 = vmul.f32 %v918, 1.442695
    %v922 = vpow.pop %v921
    %v923 = vadd.f32 %v920, 1.0
    %v924 = vadd.f32 %v922, 1.0
    %v925 = vrcp.pop %v923
    %v926 = vmul.f32 1.0, %v925
    %v927 = vrcp.pop %v924
    %v928 = vmul.f32 1.0, %v927
    %v929 = vtanh.pop %v916
    %v931 = vrot.slane %v827, 6
    %v933 = vmul.f32 %v926, %v931
    %935 = vrot.lane.b32.xlu0 %v929, 64
    %v936 = vpop.permute.xlu0 %935
    %v938 = vmul.f32 %v926, %v936
    %940 = vrot.lane.b32.xlu0 %v938, 64
    %v941 = vpop.permute.xlu0 %940
    %v943 = vadd.f32 %v933, %v941
    %v944 = vtanh.pop %v943
    %946 = vrot.lane.b32.xlu0 %v944, 64
    %v947 = vpop.permute.xlu0 %946
    %v949 = vmul.f32 %v928, %v947
    %v951 = vrot.slane %v949, 4
    %v952 = vsel %vm55, %v951, 0
    %954 = vmatprep.subr.mxu0 0.0
    %955 = vmatpush1.msra.mxu0 0.0
    %956 = vmatprep.subr.mxu0 0.0
    %957 = vmatpush1.msra.mxu0 0.0
    %958 = vmatprep.subr.mxu0 0.0
    %959 = vmatpush1.msra.mxu0 0.0
    %960 = vmatprep.subr.mxu0 0.0
    %961 = vmatpush1.msra.mxu0 0.0
    %962 = vmatprep.subr.mxu0 0.0
    %963 = vmatpush1.msra.mxu0 0.0
    %964 = vmatprep.subr.mxu0 0.0
    %965 = vmatpush1.msra.mxu0 0.0
    %966 = vmatprep.subr.mxu0 0.0
    %967 = vmatpush1.msra.mxu0 0.0
    %968 = vmatprep.subr.mxu0 0.0
    %969 = vmatpush1.msra.mxu0 0.0
    %970 = vmatprep.subr.mxu0 %v154
    %971 = vmatpush1.msra.mxu0 %v153
    %972 = vmatprep.subr.mxu0 %v152
    %973 = vmatpush1.msra.mxu0 %v151
    %974 = vmatprep.subr.mxu0 %v150
    %975 = vmatpush1.msra.mxu0 %v149
    %976 = vmatprep.subr.mxu0 %v148
    %977 = vmatpush1.msra.mxu0 %v147
    %978 = vmatprep.subr.mxu0 %v146
    %979 = vmatpush1.msra.mxu0 %v145
    %980 = vmatprep.subr.mxu0 %v144
    %981 = vmatpush1.msra.mxu0 %v143
    %982 = vmatprep.subr.mxu0 %v142
    %983 = vmatpush1.msra.mxu0 %v141
    %984 = vmatprep.subr.mxu0 %v140
    %985 = vmatpush1.msra.mxu0 %v139
    %986 = vmatprep.subr.mxu0 0.0
    %987 = vmatpush2.msra.mxu0 0.0
    %988 = vmatprep.subr.mxu0 0.0
    %989 = vmatpush2.msra.mxu0 0.0
    %990 = vmatprep.subr.mxu0 0.0
    %991 = vmatpush2.msra.mxu0 0.0
    %992 = vmatprep.subr.mxu0 0.0
    %993 = vmatpush2.msra.mxu0 0.0
    %994 = vmatprep.subr.mxu0 0.0
    %995 = vmatpush2.msra.mxu0 0.0
    %996 = vmatprep.subr.mxu0 0.0
    %997 = vmatpush2.msra.mxu0 0.0
    %998 = vmatprep.subr.mxu0 0.0
    %999 = vmatpush2.msra.mxu0 0.0
    %1000 = vmatprep.subr.mxu0 0.0
    %1001 = vmatpush2.msra.mxu0 0.0
    %1002 = vmatprep.subr.mxu0 0.0
    %1003 = vmatpush2.msra.mxu0 0.0
    %1004 = vmatprep.subr.mxu0 0.0
    %1005 = vmatpush2.msra.mxu0 0.0
    %1006 = vmatprep.subr.mxu0 0.0
    %1007 = vmatpush2.msra.mxu0 0.0
    %1008 = vmatprep.subr.mxu0 0.0
    %1009 = vmatpush2.msra.mxu0 0.0
    %1010 = vmatprep.subr.mxu0 0.0
    %1011 = vmatpush2.msra.mxu0 0.0
    %1012 = vmatprep.subr.mxu0 0.0
    %1013 = vmatpush2.msra.mxu0 0.0
    %1014 = vmatprep.subr.mxu0 0.0
    %1015 = vmatpush2.msra.mxu0 0.0
    %1016 = vmatprep.subr.mxu0 0.0
    %1017 = vmatpush2.msra.mxu0 0.0
    %1018 = vmatprep.mubr.f32.mxu0 0.0
    %1019 = vmatmul.mubr.f32.gmra.mxu0 %v952
    %v1020 = vpop.f32.mrf.mxu0
    %v1021 = vadd.f32 0.0, %v1020
    %v1022 = vpop.f32.mrf.mxu0
    %v1023 = vadd.f32 0.0, %v1022
    %1024 = vdwg.mxu0
    %v1027 = vrot.slane %v1021, 2
    %v1028 = vrot.slane %v1023, 2
    %v1031 = vadd.f32 %v135, %v1027
    %v1032 = vadd.f32 %v137, %v1028
    %v1033 = vxor.u32 %v1031, 2147483648
    %v1034 = vxor.u32 %v1032, 2147483648
    %v1035 = vmul.f32 %v1033, 1.442695
    %v1036 = vpow.pop %v1035
    %v1037 = vmul.f32 %v1034, 1.442695
    %v1038 = vpow.pop %v1037
    %v1039 = vadd.f32 %v1036, 1.0
    %v1040 = vadd.f32 %v1038, 1.0
    %v1041 = vrcp.pop %v1039
    %v1042 = vmul.f32 1.0, %v1041
    %v1043 = vrcp.pop %v1040
    %v1044 = vmul.f32 1.0, %v1043
    %v1045 = vtanh.pop %v1032
    %v1047 = vrot.slane %v943, 6
    %v1049 = vmul.f32 %v1042, %v1047
    %1051 = vrot.lane.b32.xlu0 %v1045, 64
    %v1052 = vpop.permute.xlu0 %1051
    %v1054 = vmul.f32 %v1042, %v1052
    %1056 = vrot.lane.b32.xlu0 %v1054, 64
    %v1057 = vpop.permute.xlu0 %1056
    %v1059 = vadd.f32 %v1049, %v1057
    %v1060 = vtanh.pop %v1059
    %1062 = vrot.lane.b32.xlu0 %v1060, 64
    %v1063 = vpop.permute.xlu0 %1062
    %v1065 = vmul.f32 %v1044, %v1063
    %v1067 = vlaneseq
    %v1068 = vshrl.u32 %v1067, 7
    %v1069 = vsub.s32 0, %v1068
    %v1070 = vrot.slane %v155, %v1069
    %v1072 = vmul.f32 %v261, %v1070
    %vm1073 = vcmask 254976
    %v1074 = vsel %vm1073, %v1072, 0.0
    %1075 = vadd.xlane.f32.xlu0 %v1074
    %v1076 = vpop.xlane.xlu0 %1075
    %v1077 = vmul.f32 %v1065, %v1070
    %1079 = vrot.lane.b32.xlu0 %v1077, 96
    %v1080 = vpop.permute.xlu0 %1079
    %vm1082 = vcmask 261126
    %v1083 = vsel %vm1082, %v1080, 0.0
    %1084 = vadd.xlane.f32.xlu0 %v1083
    %v1085 = vpop.xlane.xlu0 %1084
    %v1087 = vrot.slane %v1085, 6
    %v1089 = vadd.f32 %v1076, %v1087
    %v1090 = vmul.f32 %v376, %v1070
    %vm1091 = vcmask 257026
    %v1092 = vsel %vm1091, %v1090, 0.0
    %1093 = vadd.xlane.f32.xlu0 %v1092
    %v1094 = vpop.xlane.xlu0 %1093
    %v1095 = vmul.f32 %v949, %v1070
    %1097 = vrot.lane.b32.xlu0 %v1095, 96
    %v1098 = vpop.permute.xlu0 %1097
    %vm1100 = vcmask 259076
    %v1101 = vsel %vm1100, %v1098, 0.0
    %1102 = vadd.xlane.f32.xlu0 %v1101
    %v1103 = vpop.xlane.xlu0 %1102
    %v1105 = vrot.slane %v1103, 2
    %v1107 = vadd.f32 %v1094, %v1105
    %v1108 = vmul.f32 %v492, %v1070
    %v1109 = vsel %vm1100, %v1108, 0.0
    %1110 = vadd.xlane.f32.xlu0 %v1109
    %v1111 = vpop.xlane.xlu0 %1110
    %v1112 = vmul.f32 %v833, %v1070
    %1114 = vrot.lane.b32.xlu0 %v1112, 96
    %v1115 = vpop.permute.xlu0 %1114
    %v1117 = vsel %vm1091, %v1115, 0.0
    %1118 = vadd.xlane.f32.xlu0 %v1117
    %v1119 = vpop.xlane.xlu0 %1118
    %v1121 = vrot.slane %v1119, 6
    %v1123 = vadd.f32 %v1111, %v1121
    %v1124 = vmul.f32 %v608, %v1070
    %v1125 = vsel %vm1082, %v1124, 0.0
    %1126 = vadd.xlane.f32.xlu0 %v1125
    %v1127 = vpop.xlane.xlu0 %1126
    %v1128 = vmul.f32 %v718, %v1070
    %1130 = vrot.lane.b32.xlu0 %v1128, 96
    %v1131 = vpop.permute.xlu0 %1130
    %v1133 = vsel %vm1073, %v1131, 0.0
    %1134 = vadd.xlane.f32.xlu0 %v1133
    %v1135 = vpop.xlane.xlu0 %1134
    %v1137 = vrot.slane %v1135, 2
    %v1139 = vadd.f32 %v1127, %v1137
    %v1140 = vsel %vm1073, %v1128, 0.0
    %1141 = vadd.xlane.f32.xlu0 %v1140
    %v1142 = vpop.xlane.xlu0 %1141
    %1144 = vrot.lane.b32.xlu0 %v1124, 96
    %v1145 = vpop.permute.xlu0 %1144
    %v1147 = vsel %vm1082, %v1145, 0.0
    %1148 = vadd.xlane.f32.xlu0 %v1147
    %v1149 = vpop.xlane.xlu0 %1148
    %v1151 = vrot.slane %v1149, 6
    %v1153 = vadd.f32 %v1142, %v1151
    %v1154 = vsel %vm1091, %v1112, 0.0
    %1155 = vadd.xlane.f32.xlu0 %v1154
    %v1156 = vpop.xlane.xlu0 %1155
    %1158 = vrot.lane.b32.xlu0 %v1108, 96
    %v1159 = vpop.permute.xlu0 %1158
    %v1161 = vsel %vm1100, %v1159, 0.0
    %1162 = vadd.xlane.f32.xlu0 %v1161
    %v1163 = vpop.xlane.xlu0 %1162
    %v1165 = vrot.slane %v1163, 2
    %v1167 = vadd.f32 %v1156, %v1165
    %v1168 = vsel %vm1100, %v1095, 0.0
    %1169 = vadd.xlane.f32.xlu0 %v1168
    %v1170 = vpop.xlane.xlu0 %1169
    %1172 = vrot.lane.b32.xlu0 %v1090, 96
    %v1173 = vpop.permute.xlu0 %1172
    %v1175 = vsel %vm1091, %v1173, 0.0
    %1176 = vadd.xlane.f32.xlu0 %v1175
    %v1177 = vpop.xlane.xlu0 %1176
    %v1179 = vrot.slane %v1177, 6
    %v1181 = vadd.f32 %v1170, %v1179
    %v1182 = vsel %vm1082, %v1077, 0.0
    %1183 = vadd.xlane.f32.xlu0 %v1182
    %v1184 = vpop.xlane.xlu0 %1183
    %1186 = vrot.lane.b32.xlu0 %v1072, 96
    %v1187 = vpop.permute.xlu0 %1186
    %v1189 = vsel %vm1073, %v1187, 0.0
    %1190 = vadd.xlane.f32.xlu0 %v1189
    %v1191 = vpop.xlane.xlu0 %1190
    %v1193 = vrot.slane %v1191, 2
    %v1195 = vadd.f32 %v1184, %v1193
    %v1197 = vrot.slane %v1107, 2
    %1198 = vrot.lane.b32.xlu0 %v1197, 1
    %v1199 = vpop.permute.xlu0 %1198
    %v1202 = vrot.slane %v1123, 4
    %1203 = vrot.lane.b32.xlu0 %v1202, 2
    %v1204 = vpop.permute.xlu0 %1203
    %v1207 = vrot.slane %v1139, 6
    %1208 = vrot.lane.b32.xlu0 %v1207, 3
    %v1209 = vpop.permute.xlu0 %1208
    %1212 = vrot.lane.b32.xlu0 %v1153, 4
    %v1213 = vpop.permute.xlu0 %1212
    %v1216 = vrot.slane %v1167, 2
    %1217 = vrot.lane.b32.xlu0 %v1216, 5
    %v1218 = vpop.permute.xlu0 %1217
    %v1221 = vrot.slane %v1181, 4
    %1222 = vrot.lane.b32.xlu0 %v1221, 6
    %v1223 = vpop.permute.xlu0 %1222
    %v1226 = vrot.slane %v1195, 6
    %1227 = vrot.lane.b32.xlu0 %v1226, 7
    %v1228 = vpop.permute.xlu0 %1227
    %vm1230 = vcmask 7168
    %v1231 = vsel %vm1230, %v1089, %v1199
    %vm1232 = vcmask 15360
    %v1233 = vsel %vm1232, %v1231, %v1204
    %vm1234 = vcmask 23552
    %v1235 = vsel %vm1234, %v1233, %v1209
    %vm1236 = vcmask 31744
    %v1237 = vsel %vm1236, %v1235, %v1213
    %vm1238 = vcmask 39936
    %v1239 = vsel %vm1238, %v1237, %v1218
    %vm1240 = vcmask 48128
    %v1241 = vsel %vm1240, %v1239, %v1223
    %vm1242 = vcmask 56320
    %v1243 = vsel %vm1242, %v1241, %v1228
    %s1244 = sld [smem:[#allocation2]]
    %v1245 = vstv %s1244
    %v1246 = vadd.f32 %v1243, %v1245
    %vm1247 = vcmask 58368
    %1248 = vst.msk [vmem:[#allocation3] sm:$0x3] %vm1247, %v1246
    // Predicated region
    $region26: #{velocity_lstm_forward.1} parent=1 // pred_check
      _
    $region27: #{velocity_lstm_forward.1} parent=1 // pred_check_branch
      %1250 = sbr.rel (0) target = $region29
    $region28: #{velocity_lstm_forward.1} parent=1 // pred_region
      %s1252 = ssub.s32 32, 32
      %1253 = vsyncadd [#allocation4], %s1252
      %s1255 = sshll.u32 [#allocation3], 4
      %s1256 = int_to_ptr.vmem [resolvable:$true] %s1255
      %1258 = dma.vmem_to_hbm [thread:$0]  %s1256, 32, %s6, [#allocation4]
    $region29: #{velocity_lstm_forward.1} parent=1 // pred_fallthru
      _
    // Predicated region
    $region30: #{velocity_lstm_forward.1} parent=1 // pred_check
      _
    $region31: #{velocity_lstm_forward.1} parent=1 // pred_check_branch
      %1260 = sbr.rel (0) target = $region33
    $region32: #{velocity_lstm_forward.1} parent=1 // pred_region
      %1261 = dma.done [#allocation4], 32
    $region33: #{velocity_lstm_forward.1} parent=1 // pred_fallthru
      _
    %1262 = vsyncpa [#allocation4], 1

</llo_original>
